<compile_context>
chip_gen: v5e
topology: v5e:2x2
jax: 0.10.0
libtpu: 0.0.40
codegen_flags: <defaults>
</compile_context>

<pallas_src>
import functools

import numpy as np
import jax
import jax.numpy as jnp
from jax import lax
from jax.experimental import pallas as pl
from jax.experimental.pallas import tpu as pltpu

BACKGROUND_CLASS = 80
# NOTE: the `top_cost < IGNORE_COST` filter relies on w_mask*1e6 + w_miou*1e6 > 1e6,
# exactly as in the torch module (same caveat if both weights are tiny/zero).
IGNORE_COST = 1e6
_PAD_FAKE_COST = 1e30          # padded GT rows / padded point columns (never in torch)
_OOB_INDEX = np.int32(2 ** 30)  # scatter indices for padded inside pairs (mode="drop")


# --------------------------- small helpers ---------------------------

def _round_up(x, m):
    return ((x + m - 1) // m) * m


def _next_pow2(x):
    x = max(int(x), 1)
    return 1 << (x - 1).bit_length()


def _pow2_floor(x):
    x = max(int(x), 1)
    return 1 << (x.bit_length() - 1)


def _pow(x, gamma):
    if gamma == 2.0:          # exact for the default, avoids exp/log pow path
        return x * x
    return jnp.power(x, gamma)


def _pad_rows_jnp(x, n_pad, value):
    n = x.shape[0]
    if n_pad == n:
        return x
    pad = jnp.full((n_pad - n,) + x.shape[1:], value, x.dtype)
    return jnp.concatenate([x, pad], axis=0)


def _host_pad_rows(x, n_pad, value):
    n = x.shape[0]
    if n == n_pad:
        return x
    out = np.full((n_pad,) + x.shape[1:], value, x.dtype)
    out[:n] = x
    return out


# --------------------------- VMEM / tiling plans ---------------------------

def _vmem_capacity_bytes():
    cap = 128 << 20
    try:
        info = pltpu.get_tpu_info()
        cap = int(getattr(info, "vmem_capacity_bytes", cap))
    except Exception:
        pass
    return cap


def _plan_rows_pow2(n_rows, per_row_bytes, budget_bytes, min_split=1024):
    # n_rows is a power of two >= 16 (host-side bucketing), so a power-of-two tile
    # always divides it exactly (no extra padding, exact grid).
    cap = max(16, _pow2_floor(max(budget_bytes // max(int(per_row_bytes), 1), 16)))
    tile = min(cap, n_rows)
    if n_rows > min_split:
        tile = min(tile, n_rows // 2)   # keep >= 2 grid steps: pipelining + v7x dual-TC
    return tile


def _kernel1_plan(n_rows, hw, num_rays):
    phys = _vmem_capacity_bytes()
    limit = min(phys // 4, 32 << 20)                     # ~16 MiB on v7x, 32 MiB v5e/v6e
    # double-buffered bytes per row: 2 bf16 mask arrays + 2 f32 poly arrays + f32 out slab
    per_row = 2 * 2 * hw * 2 + 2 * 2 * num_rays * 4 + 2 * 128 * 4
    tr = _plan_rows_pow2(n_rows, per_row, int(limit * 0.7))
    # make sure even the minimal tile fits the scoped limit (huge-mask edge case)
    limit = min(phys, max(limit, tr * per_row + (2 << 20)))
    return tr, limit


def _plan_cols(n_cols, per_col_bytes, budget_bytes, max_tile=1024, min_split=2048):
    full = _round_up(max(int(n_cols), 1), 128)
    cap = (budget_bytes // max(int(per_col_bytes), 1)) // 128 * 128
    cap = max(128, min(max_tile, cap))
    tile = min(cap, full)
    if full > min_split:
        tile = min(tile, _round_up((full + 1) // 2, 128))   # >= 2 grid steps
    return tile, _round_up(full, tile)


def _kernel2_plan(num_points, num_classes, gp):
    phys = _vmem_capacity_bytes()
    limit = min(phys // 4, 32 << 20)
    # double-buffered bytes per point column: f32 logits + f32 cextra + f32 out
    per_col = 2 * num_classes * 4 + 4 * gp * 4
    tp, p_pad = _plan_cols(num_points, per_col, int(limit * 0.7))
    return tp, p_pad, limit


# --------------------------- Pallas kernels ---------------------------

def _inside_cost_kernel(poly_pred_ref, poly_targ_ref, mask_pred_ref, mask_targ_ref,
                        out_ref, *, w_mask, w_miou):
    # Per inside-pair reductions, fused into one scalar:
    #   w_mask * log(sum max / sum min) + w_miou * (1 - dice)        (lane 0 of out)
    pp = poly_pred_ref[...]
    pt = poly_targ_ref[...]
    l_max = jnp.sum(jnp.maximum(pp, pt), axis=1, keepdims=True)
    l_min = jnp.sum(jnp.minimum(pp, pt), axis=1, keepdims=True)
    ratio = jnp.log(l_max / l_min)                                # (TR, 1); inf/nan if a
    # poly row sums to 0 — matches the torch behavior.

    mp = mask_pred_ref[...].astype(jnp.float32)                   # bf16 -> f32 accumulate
    mt = mask_targ_ref[...].astype(jnp.float32)
    a = jnp.sum(mp * mt, axis=1, keepdims=True)
    b = jnp.sum(mp, axis=1, keepdims=True)
    c = jnp.sum(mt, axis=1, keepdims=True)
    miou = 1.0 - (2.0 * a + 1.0) / (b + c + 1.0)                  # (TR, 1)

    fused = w_mask * ratio + w_miou * miou
    lane = lax.broadcasted_iota(jnp.int32, out_ref.shape, 1)
    out_ref[...] = jnp.where(lane == 0, fused, 0.0)


def _total_cost_kernel(logits_ref, onehot_ref, cextra_ref, out_ref, *,
                       alpha, gamma, w_class):
    logits = logits_ref[...]                                      # (TP, C) f32
    p = jax.nn.sigmoid(logits)
    neg = (1.0 - alpha) * _pow(p, gamma) * (-jnp.log(1.0 - p + 1e-8))
    pos = alpha * _pow(1.0 - p, gamma) * (-jnp.log(p + 1e-8))
    diff = pos - neg                                              # (TP, C) f32
    # Per-GT class gather == rhs-transposed one-hot matmul (the q@k^T MXU pattern),
    # producing the cost GT-major so top_k can consume it with no transpose.
    # f32 operands keep the class cost exact; the kernel is DMA-bound so the extra
    # MXU passes are free.
    # TODO(synk): for num_classes > 128, gather raw logits first and apply the focal
    #             math on the (Gp, TP) result to cut EUP work (neutral at C<=128).
    cost_class_t = lax.dot_general(
        onehot_ref[...], diff,
        dimension_numbers=(((1,), (1,)), ((), ())),
        preferred_element_type=jnp.float32)                       # (Gp, TP)
    out_ref[...] = w_class * cost_class_t + cextra_ref[...]


# --------------------------- Pallas wrappers ---------------------------

def _inside_costs_pallas(poly_pred, poly_targ, mask_pred_flat, mask_targ_flat, *,
                         w_mask, w_miou):
    """Fused per inside-pair extra cost. n must be a power of two >= 16 (bucketed)."""
    n, num_rays = poly_pred.shape
    hw = mask_pred_flat.shape[1]
    tr, vmem_limit = _kernel1_plan(n, hw, num_rays)
    assert n % tr == 0

    pp = poly_pred.astype(jnp.float32)
    pt = poly_targ.astype(jnp.float32)
    mp = mask_pred_flat.astype(jnp.bfloat16)      # bf16 halves HBM bytes of the dominant
    mt = mask_targ_flat.astype(jnp.bfloat16)      # stream; accumulation stays f32

    kern = functools.partial(_inside_cost_kernel, w_mask=w_mask, w_miou=w_miou)
    out = pl.pallas_call(
        kern,
        out_shape=jax.ShapeDtypeStruct((n, 128), jnp.float32),
        grid=(n // tr,),
        in_specs=[pl.BlockSpec((tr, num_rays), lambda i: (i, 0)),
                  pl.BlockSpec((tr, num_rays), lambda i: (i, 0)),
                  pl.BlockSpec((tr, hw), lambda i: (i, 0)),
                  pl.BlockSpec((tr, hw), lambda i: (i, 0))],
        out_specs=pl.BlockSpec((tr, 128), lambda i: (i, 0)),
        compiler_params=pltpu.CompilerParams(
            dimension_semantics=("parallel",),
            vmem_limit_bytes=int(vmem_limit)),
    )(pp, pt, mp, mt)
    # TODO(synk): for small H*W the (n,128) f32 slab is ~25-30% of this kernel's HBM
    #             traffic; measure a narrower/bf16 output (kept lane-dense f32 here).
    return out[:, 0]


def _total_cost_pallas(logits_pad, onehot, cextra, *, tp, alpha, gamma, w_class,
                       vmem_limit):
    """Combined cost, GT-major: (Gp, P_pad) f32."""
    p_pad, num_classes = logits_pad.shape
    gp = onehot.shape[0]
    kern = functools.partial(_total_cost_kernel, alpha=alpha, gamma=gamma,
                             w_class=w_class)
    return pl.pallas_call(
        kern,
        out_shape=jax.ShapeDtypeStruct((gp, p_pad), jnp.float32),
        grid=(p_pad // tp,),
        in_specs=[pl.BlockSpec((tp, num_classes), lambda i: (i, 0)),
                  pl.BlockSpec((gp, num_classes), lambda i: (0, 0)),
                  pl.BlockSpec((gp, tp), lambda i: (0, i))],
        out_specs=pl.BlockSpec((gp, tp), lambda i: (0, i)),
        compiler_params=pltpu.CompilerParams(
            dimension_semantics=("parallel",),
            vmem_limit_bytes=int(vmem_limit)),
    )(logits_pad, onehot, cextra)


# --------------------------- device-side cost + top-k ---------------------------

def _cost_matrix(label_pred, labels_pad, poly_pred, poly_targ,
                 mask_pred_flat, mask_targ_flat, pt_idx, gt_idx, *,
                 alpha, gamma, w_class, w_mask, w_miou):
    num_points, num_classes = label_pred.shape
    gp = labels_pad.shape[0]                                      # multiple of 128

    # kernel 1: fused per-inside-pair extra cost
    extra = _inside_costs_pallas(poly_pred, poly_targ, mask_pred_flat, mask_targ_flat,
                                 w_mask=w_mask, w_miou=w_miou)

    tp, p_pad, vmem_limit = _kernel2_plan(num_points, num_classes, gp)

    # ONE fused extra-cost matrix, GT-major. Real non-inside pairs keep the torch
    # semantics ((w_mask+w_miou)*1e6); padded GT rows / padded point columns get a
    # huge sentinel so they can never be selected even with degenerate weights.
    pad_real = jnp.float32((w_mask + w_miou) * IGNORE_COST)
    col = lax.broadcasted_iota(jnp.int32, (gp, p_pad), 1)
    is_real = (labels_pad >= 0)[:, None] & (col < num_points)
    cextra = jnp.where(is_real, pad_real, jnp.float32(_PAD_FAKE_COST))
    cextra = cextra.at[gt_idx, pt_idx].set(extra, mode="drop")    # padded pairs dropped

    onehot = jax.nn.one_hot(labels_pad, num_classes, dtype=jnp.float32)  # (Gp, C)
    logits_pad = _pad_rows_jnp(label_pred.astype(jnp.float32), p_pad, 0.0)

    return _total_cost_pallas(logits_pad, onehot, cextra, tp=tp,
                              alpha=alpha, gamma=gamma, w_class=w_class,
                              vmem_limit=vmem_limit)              # (Gp, P_pad)


@functools.partial(jax.jit, static_argnames=("num_sample", "alpha", "gamma",
                                             "w_class", "w_mask", "w_miou"))
def _match_costs_device(label_pred, labels_pad, poly_pred, poly_targ,
                        mask_pred_flat, mask_targ_flat, pt_idx, gt_idx, *,
                        num_sample, alpha, gamma, w_class, w_mask, w_miou):
    cost_t = _cost_matrix(label_pred, labels_pad, poly_pred, poly_targ,
                          mask_pred_flat, mask_targ_flat, pt_idx, gt_idx,
                          alpha=alpha, gamma=gamma, w_class=w_class,
                          w_mask=w_mask, w_miou=w_miou)
    # Per-GT smallest-cost top-k directly on the (Gp, P_pad) kernel output (no host
    # round-trip of the full matrix, no transpose). Padded rows/columns carry huge
    # costs and are removed on host by the `top_cost < IGNORE_COST` test (torch-style).
    neg_vals, pred_ind = lax.top_k(-cost_t, num_sample)           # (Gp, k)
    return -neg_vals, pred_ind


@functools.partial(jax.jit, static_argnames=("alpha", "gamma", "w_class",
                                             "w_mask", "w_miou"))
def _debug_cost_device(label_pred, labels_pad, poly_pred, poly_targ,
                       mask_pred_flat, mask_targ_flat, pt_idx, gt_idx, *,
                       alpha, gamma, w_class, w_mask, w_miou):
    return _cost_matrix(label_pred, labels_pad, poly_pred, poly_targ,
                        mask_pred_flat, mask_targ_flat, pt_idx, gt_idx,
                        alpha=alpha, gamma=gamma, w_class=w_class,
                        w_mask=w_mask, w_miou=w_miou)


# --------------------------- host-side per-image prep ---------------------------

def _prepare_image(label_targ, label_pred, poly_targ, poly_pred,
                   mask_targ, mask_pred, inside_ind):
    num_points = int(label_pred.shape[0])
    num_gts = int(label_targ.shape[0])
    inside_np = np.asarray(inside_ind)
    pt_idx, gt_idx = np.nonzero(inside_np)          # row-major, matches torch bool indexing
    num_inside = int(pt_idx.shape[0])
    n_bucket = max(16, _next_pow2(max(num_inside, 1)))   # bound recompiles across images

    if num_inside > 0:
        pp = np.asarray(poly_pred, np.float32).reshape(num_inside, -1)
        pt = np.asarray(poly_targ, np.float32).reshape(num_inside, -1)
        mp = np.asarray(mask_pred, np.float32).reshape(num_inside, -1)
        mt = np.asarray(mask_targ, np.float32).reshape(num_inside, -1)
    else:
        pp = np.ones((0, 1), np.float32)
        pt = np.ones((0, 1), np.float32)
        mp = np.zeros((0, 1), np.float32)
        mt = np.zeros((0, 1), np.float32)

    gp = _round_up(max(num_gts, 1), 128)            # lane-dense GT axis
    labels_pad = np.full((gp,), -1, np.int32)
    labels_pad[:num_gts] = np.asarray(label_targ).astype(np.int32)

    dev = dict(
        label_pred=jnp.asarray(label_pred, jnp.float32),
        labels_pad=jnp.asarray(labels_pad),
        # pad=1.0 keeps log() finite on padded poly rows; pad masks with zeros.
        poly_pred=jnp.asarray(_host_pad_rows(pp, n_bucket, 1.0)),
        poly_targ=jnp.asarray(_host_pad_rows(pt, n_bucket, 1.0)),
        mask_pred=jnp.asarray(_host_pad_rows(mp, n_bucket, 0.0)),
        mask_targ=jnp.asarray(_host_pad_rows(mt, n_bucket, 0.0)),
        pt_idx=jnp.asarray(_host_pad_rows(pt_idx.astype(np.int32), n_bucket, _OOB_INDEX)),
        gt_idx=jnp.asarray(_host_pad_rows(gt_idx.astype(np.int32), n_bucket, _OOB_INDEX)),
    )
    meta = dict(num_points=num_points, num_gts=num_gts, num_inside=num_inside,
                pt_idx=pt_idx, gt_idx=gt_idx)
    return dev, meta


# --------------------------- matcher (per-image, two passes) ---------------------------

def top_cost_matcher(label_targs, label_preds, poly_targs, poly_preds,
                     mask_targs, mask_preds, inside_indices,
                     num_sample=9, alpha=0.25, gamma=2.0,
                     weight_class=1.0, weight_mask=1.0, weight_miou=1.0):
    pending = []
    # pass 1: dispatch every image's device work (async) before pulling anything back.
    for (label_targ, label_pred, poly_targ, poly_pred,
         mask_targ, mask_pred, inside_ind) in zip(
            label_targs, label_preds, poly_targs, poly_preds,
            mask_targs, mask_preds, inside_indices):
        num_points = int(label_pred.shape[0])
        num_gts = int(label_targ.shape[0])
        if num_gts == 0:
            pending.append((None, None,
                            dict(num_points=num_points, num_gts=0),
                            label_targ, label_pred))
            continue
        dev, meta = _prepare_image(label_targ, label_pred, poly_targ, poly_pred,
                                   mask_targ, mask_pred, inside_ind)
        top_cost_d, pred_ind_d = _match_costs_device(
            dev["label_pred"], dev["labels_pad"], dev["poly_pred"], dev["poly_targ"],
            dev["mask_pred"], dev["mask_targ"], dev["pt_idx"], dev["gt_idx"],
            num_sample=int(num_sample), alpha=float(alpha), gamma=float(gamma),
            w_class=float(weight_class), w_mask=float(weight_mask),
            w_miou=float(weight_miou))
        pending.append((top_cost_d, pred_ind_d, meta, label_targ, label_pred))

    matched_class_targs_list = []
    matched_pos_indices = []
    # pass 2: pull the small (Gp, k) results and do the variable-length match assembly.
    for top_cost_d, pred_ind_d, meta, label_targ, label_pred in pending:
        num_points, num_gts = meta["num_points"], meta["num_gts"]
        if num_gts == 0:
            matched_pos_indices.append(
                np.full((num_points,), BACKGROUND_CLASS, dtype=label_pred.dtype))
            matched_class_targs_list.append(np.zeros((0,), dtype=np.int64))
            continue

        top_cost = np.asarray(top_cost_d)[:num_gts].T            # (k, G) — torch layout
        pred_ind = np.asarray(pred_ind_d)[:num_gts].T            # (k, G)
        gt_ind = np.tile(np.arange(num_gts, dtype=pred_ind.dtype)[None, :],
                         (int(num_sample), 1))
        unignored = top_cost < IGNORE_COST
        flatten_pred_ind = pred_ind[unignored]
        flatten_gt_ind = gt_ind[unignored]

        label_targ_np = np.asarray(label_targ)
        pos_class_targ = np.full((num_points,), BACKGROUND_CLASS,
                                 dtype=label_targ_np.dtype)
        pos_class_targ[flatten_pred_ind] = label_targ_np[flatten_gt_ind]
        matched_class_targs_list.append(pos_class_targ)

        inside_states = np.full((num_points, num_gts), -1, dtype=pred_ind.dtype)
        inside_states[meta["pt_idx"], meta["gt_idx"]] = np.arange(
            meta["num_inside"], dtype=pred_ind.dtype)
        pos_indices = inside_states[flatten_pred_ind, flatten_gt_ind]
        matched_pos_indices.append(pos_indices)

    return matched_class_targs_list, matched_pos_indices


# --------------------------- numpy references (sanity checks) ---------------------------

def _reference_cost_numpy(label_targ, label_pred, poly_targ, poly_pred,
                          mask_targ, mask_pred, inside_mask,
                          alpha, gamma, w_class, w_mask, w_miou):
    lp = np.asarray(label_pred, np.float64)
    p = 1.0 / (1.0 + np.exp(-lp))
    neg = (1 - alpha) * p ** gamma * -np.log(1 - p + 1e-8)
    pos = alpha * (1 - p) ** gamma * -np.log(p + 1e-8)
    lt = np.asarray(label_targ).astype(np.int64)
    cost_class = (pos - neg)[:, lt]
    P, G = cost_class.shape
    ins = np.asarray(inside_mask)
    pp = np.asarray(poly_pred, np.float64)
    pt = np.asarray(poly_targ, np.float64)
    n = pp.shape[0]
    cmask = np.full((P, G), IGNORE_COST, np.float64)
    cmiou = np.full((P, G), IGNORE_COST, np.float64)
    if n:
        cmask[ins] = np.log(np.maximum(pp, pt).sum(1) / np.minimum(pp, pt).sum(1))
        mp = np.asarray(mask_pred, np.float64).reshape(n, -1)
        mt = np.asarray(mask_targ, np.float64).reshape(n, -1)
        a = (mp * mt).sum(1); b = mp.sum(1); c = mt.sum(1)
        cmiou[ins] = 1.0 - (2.0 * a + 1.0) / (b + c + 1.0)
    return w_class * cost_class + w_mask * cmask + w_miou * cmiou


def _reference_matcher_numpy(label_targ, label_pred, poly_targ, poly_pred,
                             mask_targ, mask_pred, inside_mask, num_sample,
                             alpha, gamma, w_class, w_mask, w_miou):
    C = _reference_cost_numpy(label_targ, label_pred, poly_targ, poly_pred,
                              mask_targ, mask_pred, inside_mask,
                              alpha, gamma, w_class, w_mask, w_miou)
    P, G = C.shape
    order = np.argsort(C, axis=0, kind="stable")[:num_sample]     # (k, G)
    top_cost = np.take_along_axis(C, order, axis=0)
    gt_ind = np.tile(np.arange(G)[None, :], (num_sample, 1))
    unign = top_cost < IGNORE_COST
    fp = order[unign]; fg = gt_ind[unign]
    lt = np.asarray(label_targ)
    pos_class = np.full((P,), BACKGROUND_CLASS, dtype=lt.dtype)
    pos_class[fp] = lt[fg]
    ptn, gtn = np.nonzero(np.asarray(inside_mask))
    states = np.full((P, G), -1, np.int64)
    states[ptn, gtn] = np.arange(ptn.shape[0])
    return pos_class, states[fp, fg]


# --------------------------- demo ---------------------------

if __name__ == "__main__":
    num_points, num_classes = 64, 80
    num_rays, H, W = 36, 16, 16
    num_sample = 9
    keys = jax.random.split(jax.random.PRNGKey(0), 10)

    # image 0: sparse inside pattern (each point in <=1 GT, each GT <= num_sample inside
    # points) so the exact match comparison is numerically robust.
    label_targ0 = np.array([3, 17, 42], dtype=np.int64)
    label_pred0 = jax.random.normal(keys[0], (num_points, num_classes), jnp.float32)
    inside0 = np.zeros((num_points, 3), dtype=bool)
    inside0[0:7, 0] = True; inside0[10:16, 1] = True; inside0[20:28, 2] = True
    n0 = int(inside0.sum())
    poly_pred0 = jax.random.uniform(keys[1], (n0, num_rays), jnp.float32, 0.5, 5.0)
    poly_targ0 = jax.random.uniform(keys[2], (n0, num_rays), jnp.float32, 0.5, 5.0)
    mask_pred0 = jax.nn.sigmoid(jax.random.normal(keys[3], (n0, H, W), jnp.float32))
    mask_targ0 = (jax.random.uniform(keys[4], (n0, H, W)) > 0.5).astype(jnp.float32)

    # image 1: dense inside pattern (> num_sample inside points per GT) to exercise the
    # top-k cutoff; validated structurally + via the cost matrix.
    label_targ1 = np.array([5, 60], dtype=np.int64)
    label_pred1 = jax.random.normal(keys[5], (num_points, num_classes), jnp.float32)
    inside1 = np.zeros((num_points, 2), dtype=bool)
    inside1[::2, 0] = True; inside1[1::3, 1] = True
    n1 = int(inside1.sum())
    poly_pred1 = jax.random.uniform(keys[6], (n1, num_rays), jnp.float32, 0.5, 5.0)
    poly_targ1 = jax.random.uniform(keys[7], (n1, num_rays), jnp.float32, 0.5, 5.0)
    mask_pred1 = jax.nn.sigmoid(jax.random.normal(keys[8], (n1, H, W), jnp.float32))
    mask_targ1 = (jax.random.uniform(keys[9], (n1, H, W)) > 0.5).astype(jnp.float32)

    # image 2: zero GTs (exercises the empty branch)
    label_targ2 = np.zeros((0,), dtype=np.int64)
    label_pred2 = jax.random.normal(jax.random.PRNGKey(1),
                                    (num_points, num_classes), jnp.float32)
    poly2 = jnp.zeros((0, num_rays), jnp.float32)
    mask2 = jnp.zeros((0, H, W), jnp.float32)
    inside2 = np.zeros((num_points, 0), dtype=bool)

    cls_targs, pos_inds = top_cost_matcher(
        [label_targ0, label_targ1, label_targ2],
        [label_pred0, label_pred1, label_pred2],
        [poly_targ0, poly_targ1, poly2],
        [poly_pred0, poly_pred1, poly2],
        [mask_targ0, mask_targ1, mask2],
        [mask_pred0, mask_pred1, mask2],
        [inside0, inside1, inside2],
        num_sample=num_sample)

    # ---- cost-matrix check vs a float64 numpy reference (bf16-quantized masks) ----
    def quant_bf16(x):
        return np.asarray(jnp.asarray(x, jnp.bfloat16).astype(jnp.float32))

    def device_cost(lt, lp, ptg, ppd, mtg, mpd, ins):
        dev, meta = _prepare_image(lt, lp, ptg, ppd, mtg, mpd, ins)
        c = _debug_cost_device(dev["label_pred"], dev["labels_pad"], dev["poly_pred"],
                               dev["poly_targ"], dev["mask_pred"], dev["mask_targ"],
                               dev["pt_idx"], dev["gt_idx"],
                               alpha=0.25, gamma=2.0, w_class=1.0,
                               w_mask=1.0, w_miou=1.0)
        c = np.asarray(jax.block_until_ready(c))
        return c[:meta["num_gts"], :meta["num_points"]].T        # (P, G), torch layout

    for (lt, lp, ptg, ppd, mtg, mpd, ins) in [
            (label_targ0, label_pred0, poly_targ0, poly_pred0, mask_targ0, mask_pred0, inside0),
            (label_targ1, label_pred1, poly_targ1, poly_pred1, mask_targ1, mask_pred1, inside1)]:
        C_dev = device_cost(lt, lp, ptg, ppd, mtg, mpd, ins)
        C_ref = _reference_cost_numpy(lt, lp, ptg, ppd, quant_bf16(mtg), quant_bf16(mpd),
                                      ins, 0.25, 2.0, 1.0, 1.0, 1.0)
        np.testing.assert_allclose(C_dev, C_ref, rtol=5e-3, atol=2e-2)

    # ---- image 0: exact match against the numpy reference matcher ----
    ref_cls0, ref_pos0 = _reference_matcher_numpy(
        label_targ0, label_pred0, poly_targ0, poly_pred0,
        quant_bf16(mask_targ0), quant_bf16(mask_pred0), inside0,
        num_sample, 0.25, 2.0, 1.0, 1.0, 1.0)
    assert np.array_equal(np.asarray(cls_targs[0]), ref_cls0)
    assert np.array_equal(np.sort(np.asarray(pos_inds[0])), np.sort(ref_pos0))

    # ---- image 1: structural checks (top-k cutoff exercised) ----
    assert cls_targs[1].shape == (num_points,)
    nonbg = np.asarray(cls_targs[1]) != BACKGROUND_CLASS
    assert set(np.asarray(cls_targs[1])[nonbg].tolist()) <= set(label_targ1.tolist())
    assert pos_inds[1].shape == (num_sample * 2,)
    assert np.all(pos_inds[1] >= 0) and np.all(pos_inds[1] < n1)

    # ---- image 2: empty-GT branch ----
    assert cls_targs[2].shape == (0,)
    assert pos_inds[2].shape == (num_points,)
    assert np.all(np.asarray(pos_inds[2]) == BACKGROUND_CLASS)

    print("KERNEL_OK")
</pallas_src>

<mosaic_0001>
module attributes {stable_mosaic.version = 11 : i64} {
  func.func @_inside_cost_kernel(%arg0: i32, %arg1: memref<32x36xf32, #tpu.memory_space<vmem>>, %arg2: memref<32x36xf32, #tpu.memory_space<vmem>>, %arg3: memref<32x256xbf16, #tpu.memory_space<vmem>>, %arg4: memref<32x256xbf16, #tpu.memory_space<vmem>>, %arg5: memref<32x128xf32, #tpu.memory_space<vmem>>) attributes {dimension_semantics = [#tpu.dimension_semantics<parallel>], iteration_bounds = array<i64: 1>, scalar_prefetch = 0 : i64, scratch_operands = 0 : i64, tpu.core_type = #tpu.core_type<tc>, window_params = [{transform_indices = @transform_0, window_bounds = array<i64: 32, 36>}, {transform_indices = @transform_1, window_bounds = array<i64: 32, 36>}, {transform_indices = @transform_2, window_bounds = array<i64: 32, 256>}, {transform_indices = @transform_3, window_bounds = array<i64: 32, 256>}, {transform_indices = @transform_4, window_bounds = array<i64: 32, 128>}]} {
    %c0 = arith.constant 0 : index
    %c0_0 = arith.constant 0 : index
    %0 = vector.load %arg1[%c0, %c0_0] : memref<32x36xf32, #tpu.memory_space<vmem>>, vector<32x36xf32>
    %c0_1 = arith.constant 0 : index
    %c0_2 = arith.constant 0 : index
    %1 = vector.load %arg2[%c0_1, %c0_2] : memref<32x36xf32, #tpu.memory_space<vmem>>, vector<32x36xf32>
    %2 = arith.maximumf %0, %1 : vector<32x36xf32>
    %cst = arith.constant dense<0.000000e+00> : vector<32xf32>
    %3 = vector.multi_reduction <add>, %2, %cst [1] : vector<32x36xf32> to vector<32xf32>
    %4 = vector.shape_cast %3 : vector<32xf32> to vector<32x1xf32>
    %5 = arith.minimumf %0, %1 : vector<32x36xf32>
    %cst_3 = arith.constant dense<0.000000e+00> : vector<32xf32>
    %6 = vector.multi_reduction <add>, %5, %cst_3 [1] : vector<32x36xf32> to vector<32xf32>
    %7 = vector.shape_cast %6 : vector<32xf32> to vector<32x1xf32>
    %8 = arith.divf %4, %7 : vector<32x1xf32>
    %9 = math.log %8 : vector<32x1xf32>
    %c0_4 = arith.constant 0 : index
    %c0_5 = arith.constant 0 : index
    %10 = vector.load %arg3[%c0_4, %c0_5] : memref<32x256xbf16, #tpu.memory_space<vmem>>, vector<32x256xbf16>
    %11 = arith.extf %10 : vector<32x256xbf16> to vector<32x256xf32>
    %c0_6 = arith.constant 0 : index
    %c0_7 = arith.constant 0 : index
    %12 = vector.load %arg4[%c0_6, %c0_7] : memref<32x256xbf16, #tpu.memory_space<vmem>>, vector<32x256xbf16>
    %13 = arith.extf %12 : vector<32x256xbf16> to vector<32x256xf32>
    %14 = arith.mulf %11, %13 : vector<32x256xf32>
    %cst_8 = arith.constant dense<0.000000e+00> : vector<32xf32>
    %15 = vector.multi_reduction <add>, %14, %cst_8 [1] : vector<32x256xf32> to vector<32xf32>
    %16 = vector.shape_cast %15 : vector<32xf32> to vector<32x1xf32>
    %cst_9 = arith.constant dense<0.000000e+00> : vector<32xf32>
    %17 = vector.multi_reduction <add>, %11, %cst_9 [1] : vector<32x256xf32> to vector<32xf32>
    %18 = vector.shape_cast %17 : vector<32xf32> to vector<32x1xf32>
    %cst_10 = arith.constant dense<0.000000e+00> : vector<32xf32>
    %19 = vector.multi_reduction <add>, %13, %cst_10 [1] : vector<32x256xf32> to vector<32xf32>
    %20 = vector.shape_cast %19 : vector<32xf32> to vector<32x1xf32>
    %cst_11 = arith.constant 2.000000e+00 : f32
    %21 = vector.broadcast %cst_11 : f32 to vector<32x1xf32>
    %22 = arith.mulf %21, %16 : vector<32x1xf32>
    %cst_12 = arith.constant 1.000000e+00 : f32
    %23 = vector.broadcast %cst_12 : f32 to vector<32x1xf32>
    %24 = arith.addf %22, %23 : vector<32x1xf32>
    %25 = arith.addf %18, %20 : vector<32x1xf32>
    %cst_13 = arith.constant 1.000000e+00 : f32
    %26 = vector.broadcast %cst_13 : f32 to vector<32x1xf32>
    %27 = arith.addf %25, %26 : vector<32x1xf32>
    %28 = arith.divf %24, %27 : vector<32x1xf32>
    %cst_14 = arith.constant 1.000000e+00 : f32
    %29 = vector.broadcast %cst_14 : f32 to vector<32x1xf32>
    %30 = arith.subf %29, %28 : vector<32x1xf32>
    %cst_15 = arith.constant 1.000000e+00 : f32
    %31 = vector.broadcast %cst_15 : f32 to vector<32x1xf32>
    %32 = arith.mulf %31, %9 : vector<32x1xf32>
    %cst_16 = arith.constant 1.000000e+00 : f32
    %33 = vector.broadcast %cst_16 : f32 to vector<32x1xf32>
    %34 = arith.mulf %33, %30 : vector<32x1xf32>
    %35 = arith.addf %32, %34 : vector<32x1xf32>
    %36 = tpu.iota {dimensions = array<i32: 1>} : vector<32x128xi32>
    %c0_i32 = arith.constant 0 : i32
    %37 = vector.broadcast %c0_i32 : i32 to vector<32x128xi32>
    %38 = arith.cmpi eq, %36, %37 : vector<32x128xi32>
    %cst_17 = arith.constant 0.000000e+00 : f32
    %39 = vector.shape_cast %35 : vector<32x1xf32> to vector<32x1xf32>
    %40 = vector.broadcast %39 : vector<32x1xf32> to vector<32x128xf32>
    %41 = vector.broadcast %cst_17 : f32 to vector<32x128xf32>
    %42 = arith.select %38, %40, %41 : vector<32x128xi1>, vector<32x128xf32>
    %c0_18 = arith.constant 0 : index
    %c0_19 = arith.constant 0 : index
    %43 = vector.load %arg5[%c0_18, %c0_19] : memref<32x128xf32, #tpu.memory_space<vmem>>, vector<32x128xf32>
    tpu.vector_store %arg5[%c0_18, %c0_19], %42 {strides = array<i32>} : memref<32x128xf32, #tpu.memory_space<vmem>>, vector<32x128xf32>,
    return
  }
  func.func @transform_0(%arg0: i32) -> (i32, i32) {
    %c0_i32 = arith.constant 0 : i32
    %c0_i32_0 = arith.constant 0 : i32
    return %arg0, %c0_i32 : i32, i32
  }
  func.func @transform_1(%arg0: i32) -> (i32, i32) {
    %c0_i32 = arith.constant 0 : i32
    %c0_i32_0 = arith.constant 0 : i32
    return %arg0, %c0_i32 : i32, i32
  }
  func.func @transform_2(%arg0: i32) -> (i32, i32) {
    %c0_i32 = arith.constant 0 : i32
    %c0_i32_0 = arith.constant 0 : i32
    return %arg0, %c0_i32 : i32, i32
  }
  func.func @transform_3(%arg0: i32) -> (i32, i32) {
    %c0_i32 = arith.constant 0 : i32
    %c0_i32_0 = arith.constant 0 : i32
    return %arg0, %c0_i32 : i32, i32
  }
  func.func @transform_4(%arg0: i32) -> (i32, i32) {
    %c0_i32 = arith.constant 0 : i32
    %c0_i32_0 = arith.constant 0 : i32
    return %arg0, %c0_i32 : i32, i32
  }
}

module attributes {stable_mosaic.version = 11 : i64} {
  func.func @_total_cost_kernel(%arg0: i32, %arg1: memref<128x80xf32, #tpu.memory_space<vmem>>, %arg2: memref<128x80xf32, #tpu.memory_space<vmem>>, %arg3: memref<128x128xf32, #tpu.memory_space<vmem>>, %arg4: memref<128x128xf32, #tpu.memory_space<vmem>>) attributes {dimension_semantics = [#tpu.dimension_semantics<parallel>], iteration_bounds = array<i64: 1>, scalar_prefetch = 0 : i64, scratch_operands = 0 : i64, tpu.core_type = #tpu.core_type<tc>, window_params = [{transform_indices = @transform_0, window_bounds = array<i64: 128, 80>}, {pipeline_mode = #tpu.pipeline_mode<synchronous>, transform_indices = @transform_1, window_bounds = array<i64: 128, 80>}, {transform_indices = @transform_2, window_bounds = array<i64: 128, 128>}, {transform_indices = @transform_3, window_bounds = array<i64: 128, 128>}]} {
    %c0 = arith.constant 0 : index
    %c0_0 = arith.constant 0 : index
    %0 = vector.load %arg1[%c0, %c0_0] : memref<128x80xf32, #tpu.memory_space<vmem>>, vector<128x80xf32>
    %1 = arith.negf %0 : vector<128x80xf32>
    %2 = math.exp %1 : vector<128x80xf32>
    %cst = arith.constant 1.000000e+00 : f32
    %3 = vector.broadcast %cst : f32 to vector<128x80xf32>
    %4 = arith.addf %3, %2 : vector<128x80xf32>
    %5 = arith.divf %3, %4 : vector<128x80xf32>
    %6 = arith.mulf %5, %5 : vector<128x80xf32>
    %cst_1 = arith.constant 7.500000e-01 : f32
    %7 = vector.broadcast %cst_1 : f32 to vector<128x80xf32>
    %8 = arith.mulf %7, %6 : vector<128x80xf32>
    %cst_2 = arith.constant 1.000000e+00 : f32
    %9 = vector.broadcast %cst_2 : f32 to vector<128x80xf32>
    %10 = arith.subf %9, %5 : vector<128x80xf32>
    %cst_3 = arith.constant 9.99999993E-9 : f32
    %11 = vector.broadcast %cst_3 : f32 to vector<128x80xf32>
    %12 = arith.addf %10, %11 : vector<128x80xf32>
    %13 = math.log %12 : vector<128x80xf32>
    %cst_4 = arith.constant 0.000000e+00 : f32
    %14 = vector.broadcast %cst_4 : f32 to vector<128x80xf32>
    %15 = arith.subf %14, %13 : vector<128x80xf32>
    %16 = arith.mulf %8, %15 : vector<128x80xf32>
    %cst_5 = arith.constant 1.000000e+00 : f32
    %17 = vector.broadcast %cst_5 : f32 to vector<128x80xf32>
    %18 = arith.subf %17, %5 : vector<128x80xf32>
    %19 = arith.mulf %18, %18 : vector<128x80xf32>
    %cst_6 = arith.constant 2.500000e-01 : f32
    %20 = vector.broadcast %cst_6 : f32 to vector<128x80xf32>
    %21 = arith.mulf %20, %19 : vector<128x80xf32>
    %cst_7 = arith.constant 9.99999993E-9 : f32
    %22 = vector.broadcast %cst_7 : f32 to vector<128x80xf32>
    %23 = arith.addf %5, %22 : vector<128x80xf32>
    %24 = math.log %23 : vector<128x80xf32>
    %cst_8 = arith.constant 0.000000e+00 : f32
    %25 = vector.broadcast %cst_8 : f32 to vector<128x80xf32>
    %26 = arith.subf %25, %24 : vector<128x80xf32>
    %27 = arith.mulf %21, %26 : vector<128x80xf32>
    %28 = arith.subf %27, %16 : vector<128x80xf32>
    %c0_9 = arith.constant 0 : index
    %c0_10 = arith.constant 0 : index
    %29 = vector.load %arg2[%c0_9, %c0_10] : memref<128x80xf32, #tpu.memory_space<vmem>>, vector<128x80xf32>
    %cst_11 = arith.constant dense<0.000000e+00> : vector<128x128xf32>
    %30 = tpu.matmul %29, %28, %cst_11 {dimension_numbers = #tpu.dot_dimension_numbers<[1], [1], [0], [0], [0, 0, 1, 0], [], []>} : vector<128x80xf32>, vector<128x80xf32>, vector<128x128xf32> -> vector<128x128xf32>
    %cst_12 = arith.constant 1.000000e+00 : f32
    %31 = vector.broadcast %cst_12 : f32 to vector<128x128xf32>
    %32 = arith.mulf %31, %30 : vector<128x128xf32>
    %c0_13 = arith.constant 0 : index
    %c0_14 = arith.constant 0 : index
    %33 = vector.load %arg3[%c0_13, %c0_14] : memref<128x128xf32, #tpu.memory_space<vmem>>, vector<128x128xf32>
    %34 = arith.addf %32, %33 : vector<128x128xf32>
    %c0_15 = arith.constant 0 : index
    %c0_16 = arith.constant 0 : index
    %35 = vector.load %arg4[%c0_15, %c0_16] : memref<128x128xf32, #tpu.memory_space<vmem>>, vector<128x128xf32>
    tpu.vector_store %arg4[%c0_15, %c0_16], %34 {strides = array<i32>} : memref<128x128xf32, #tpu.memory_space<vmem>>, vector<128x128xf32>,
    return
  }
  func.func @transform_0(%arg0: i32) -> (i32, i32) {
    %c0_i32 = arith.constant 0 : i32
    %c0_i32_0 = arith.constant 0 : i32
    return %arg0, %c0_i32 : i32, i32
  }
  func.func @transform_1(%arg0: i32) -> (i32, i32) {
    %c0_i32 = arith.constant 0 : i32
    %c0_i32_0 = arith.constant 0 : i32
    %c0_i32_1 = arith.constant 0 : i32
    return %c0_i32, %c0_i32_0 : i32, i32
  }
  func.func @transform_2(%arg0: i32) -> (i32, i32) {
    %c0_i32 = arith.constant 0 : i32
    %c0_i32_0 = arith.constant 0 : i32
    return %c0_i32, %arg0 : i32, i32
  }
  func.func @transform_3(%arg0: i32) -> (i32, i32) {
    %c0_i32 = arith.constant 0 : i32
    %c0_i32_0 = arith.constant 0 : i32
    return %c0_i32, %arg0 : i32, i32
  }
}

</mosaic_0001>

<llo_original>
// kernel: neg.2
$region0: #{neg.2}
  #allocation0 [shape = 's32[1]{0}', space=sflag, size = 0x4, scoped, tag = 'scoped memory for neg.2']
  %s0 = inlined_call_operand.vmem [shape: f32[128,128], index: 0, kind: input, shape index: {}]
  %s1 = inlined_call_operand.vmem [shape: f32[128,128], index: 1, kind: output, shape index: {}]
  %v2 = vld [vmem:[%s0] sm:$0xff]
  %3 = xla_tuple %v2
  %4 = xla_tuple %3
  %v5 = vxor.u32 %v2, 2147483648
  %6 = xla_tuple %v5
  %7 = vst [vmem:[%s1] sm:$0xff] %v5
  %s8 = scalar_lea.vmem %s0, 8
  %v9 = vld [vmem:[%s8] sm:$0xff]
  %10 = xla_tuple %v9
  %11 = xla_tuple %10
  %v12 = vxor.u32 %v9, 2147483648
  %13 = xla_tuple %v12
  %s14 = scalar_lea.vmem %s1, 8
  %15 = vst [vmem:[%s14] sm:$0xff] %v12
  %s16 = scalar_lea.vmem %s0, 16
  %v17 = vld [vmem:[%s16] sm:$0xff]
  %18 = xla_tuple %v17
  %19 = xla_tuple %18
  %v20 = vxor.u32 %v17, 2147483648
  %21 = xla_tuple %v20
  %s22 = scalar_lea.vmem %s1, 16
  %23 = vst [vmem:[%s22] sm:$0xff] %v20
  %s24 = scalar_lea.vmem %s0, 24
  %v25 = vld [vmem:[%s24] sm:$0xff]
  %26 = xla_tuple %v25
  %27 = xla_tuple %26
  %v28 = vxor.u32 %v25, 2147483648
  %29 = xla_tuple %v28
  %s30 = scalar_lea.vmem %s1, 24
  %31 = vst [vmem:[%s30] sm:$0xff] %v28
  %s32 = scalar_lea.vmem %s0, 32
  %v33 = vld [vmem:[%s32] sm:$0xff]
  %34 = xla_tuple %v33
  %35 = xla_tuple %34
  %v36 = vxor.u32 %v33, 2147483648
  %37 = xla_tuple %v36
  %s38 = scalar_lea.vmem %s1, 32
  %39 = vst [vmem:[%s38] sm:$0xff] %v36
  %s40 = scalar_lea.vmem %s0, 40
  %v41 = vld [vmem:[%s40] sm:$0xff]
  %42 = xla_tuple %v41
  %43 = xla_tuple %42
  %v44 = vxor.u32 %v41, 2147483648
  %45 = xla_tuple %v44
  %s46 = scalar_lea.vmem %s1, 40
  %47 = vst [vmem:[%s46] sm:$0xff] %v44
  %s48 = scalar_lea.vmem %s0, 48
  %v49 = vld [vmem:[%s48] sm:$0xff]
  %50 = xla_tuple %v49
  %51 = xla_tuple %50
  %v52 = vxor.u32 %v49, 2147483648
  %53 = xla_tuple %v52
  %s54 = scalar_lea.vmem %s1, 48
  %55 = vst [vmem:[%s54] sm:$0xff] %v52
  %s56 = scalar_lea.vmem %s0, 56
  %v57 = vld [vmem:[%s56] sm:$0xff]
  %58 = xla_tuple %v57
  %59 = xla_tuple %58
  %v60 = vxor.u32 %v57, 2147483648
  %61 = xla_tuple %v60
  %s62 = scalar_lea.vmem %s1, 56
  %63 = vst [vmem:[%s62] sm:$0xff] %v60
  %s64 = scalar_lea.vmem %s0, 64
  %v65 = vld [vmem:[%s64] sm:$0xff]
  %66 = xla_tuple %v65
  %67 = xla_tuple %66
  %v68 = vxor.u32 %v65, 2147483648
  %69 = xla_tuple %v68
  %s70 = scalar_lea.vmem %s1, 64
  %71 = vst [vmem:[%s70] sm:$0xff] %v68
  %s72 = scalar_lea.vmem %s0, 72
  %v73 = vld [vmem:[%s72] sm:$0xff]
  %74 = xla_tuple %v73
  %75 = xla_tuple %74
  %v76 = vxor.u32 %v73, 2147483648
  %77 = xla_tuple %v76
  %s78 = scalar_lea.vmem %s1, 72
  %79 = vst [vmem:[%s78] sm:$0xff] %v76
  %s80 = scalar_lea.vmem %s0, 80
  %v81 = vld [vmem:[%s80] sm:$0xff]
  %82 = xla_tuple %v81
  %83 = xla_tuple %82
  %v84 = vxor.u32 %v81, 2147483648
  %85 = xla_tuple %v84
  %s86 = scalar_lea.vmem %s1, 80
  %87 = vst [vmem:[%s86] sm:$0xff] %v84
  %s88 = scalar_lea.vmem %s0, 88
  %v89 = vld [vmem:[%s88] sm:$0xff]
  %90 = xla_tuple %v89
  %91 = xla_tuple %90
  %v92 = vxor.u32 %v89, 2147483648
  %93 = xla_tuple %v92
  %s94 = scalar_lea.vmem %s1, 88
  %95 = vst [vmem:[%s94] sm:$0xff] %v92
  %s96 = scalar_lea.vmem %s0, 96
  %v97 = vld [vmem:[%s96] sm:$0xff]
  %98 = xla_tuple %v97
  %99 = xla_tuple %98
  %v100 = vxor.u32 %v97, 2147483648
  %101 = xla_tuple %v100
  %s102 = scalar_lea.vmem %s1, 96
  %103 = vst [vmem:[%s102] sm:$0xff] %v100
  %s104 = scalar_lea.vmem %s0, 104
  %v105 = vld [vmem:[%s104] sm:$0xff]
  %106 = xla_tuple %v105
  %107 = xla_tuple %106
  %v108 = vxor.u32 %v105, 2147483648
  %109 = xla_tuple %v108
  %s110 = scalar_lea.vmem %s1, 104
  %111 = vst [vmem:[%s110] sm:$0xff] %v108
  %s112 = scalar_lea.vmem %s0, 112
  %v113 = vld [vmem:[%s112] sm:$0xff]
  %114 = xla_tuple %v113
  %115 = xla_tuple %114
  %v116 = vxor.u32 %v113, 2147483648
  %117 = xla_tuple %v116
  %s118 = scalar_lea.vmem %s1, 112
  %119 = vst [vmem:[%s118] sm:$0xff] %v116
  %s120 = scalar_lea.vmem %s0, 120
  %v121 = vld [vmem:[%s120] sm:$0xff]
  %122 = xla_tuple %v121
  %123 = xla_tuple %122
  %v124 = vxor.u32 %v121, 2147483648
  %125 = xla_tuple %v124
  %s126 = scalar_lea.vmem %s1, 120
  %127 = vst [vmem:[%s126] sm:$0xff] %v124

// kernel: _match_costs_device.2
$region0: #{_match_costs_device.2}
  #allocation0 [shape = 'u32[]', space=smem, size = 0x4, offset = 0x4, fixed_abs, tag = 'smem constant byte address 0x4 - core index']
  #allocation1 [shape = 'u32[72,128]{1,0:T(1,128)}', space=vmem, size = 0x9000, scoped, tag = 'internal scratch']
  %s0 = inlined_call_operand.vmem [shape: f32[32,36], index: 0, kind: input, shape index: {}]
  %s1 = inlined_call_operand.vmem [shape: f32[32,36], index: 1, kind: input, shape index: {}]
  %s2 = inlined_call_operand.vmem [shape: bf16[32,256], index: 2, kind: input, shape index: {}]
  %s3 = inlined_call_operand.vmem [shape: bf16[32,256], index: 3, kind: input, shape index: {}]
  %s4 = inlined_call_operand.vmem [shape: f32[32,128], index: 4, kind: output, shape index: {}]
  %s5 = sld [smem:[#allocation0]]
  $region26: #{_match_costs_device.2} parent=0
    _
  %s7 = ssub.s32 1, %s5
  %s8 = scalar_select 0, %s7, %s5
  // Predicated region
  $region2: #{_match_costs_device.2} parent=0 // pred_check
    _
  $region3: #{_match_costs_device.2} parent=0 // pred_check_branch
    %10 = sbr.rel (0) target = $region5
  $region4: #{_match_costs_device.2} parent=0 // pred_region
    _
  $region5: #{_match_costs_device.2} parent=0 // pred_fallthru
    _
  // Predicated region
  $region6: #{_match_costs_device.2} parent=0 // pred_check
    _
  $region7: #{_match_costs_device.2} parent=0 // pred_check_branch
    %12 = sbr.rel (0) target = $region9
  $region8: #{_match_costs_device.2} parent=0 // pred_region
    _
  $region9: #{_match_costs_device.2} parent=0 // pred_fallthru
    _
  // Predicated region
  $region10: #{_match_costs_device.2} parent=0 // pred_check
    _
  $region11: #{_match_costs_device.2} parent=0 // pred_check_branch
    %14 = sbr.rel (0) target = $region13
  $region12: #{_match_costs_device.2} parent=0 // pred_region
    _
  $region13: #{_match_costs_device.2} parent=0 // pred_fallthru
    _
  // Predicated region
  $region14: #{_match_costs_device.2} parent=0 // pred_check
    _
  $region15: #{_match_costs_device.2} parent=0 // pred_check_branch
    %16 = sbr.rel (0) target = $region17
  $region16: #{_match_costs_device.2} parent=0 // pred_region
    _
  $region17: #{_match_costs_device.2} parent=0 // pred_fallthru
    _
  %v17 = vld [vmem:[%s0] sm:$0xff]
  %v18 = vld [vmem:[%s0 + $0x8] sm:$0xff]
  %v19 = vld [vmem:[%s0 + $0x10] sm:$0xff]
  %v20 = vld [vmem:[%s0 + $0x18] sm:$0xff]
  %v21 = vld [vmem:[%s1] sm:$0xff]
  %v22 = vld [vmem:[%s1 + $0x8] sm:$0xff]
  %v23 = vld [vmem:[%s1 + $0x10] sm:$0xff]
  %v24 = vld [vmem:[%s1 + $0x18] sm:$0xff]
  %v25 = vmax.f32 %v17, %v21
  %v26 = vmax.f32 %v18, %v22
  %v27 = vmax.f32 %v19, %v23
  %v28 = vmax.f32 %v20, %v24
  %vm29 = vcmask 293888
  %v30 = vsel %vm29, %v25, 0.0
  %31 = vadd.xlane.f32.xlu0 %v30
  %v32 = vpop.xlane.xlu0 %31
  %v33 = vsel %vm29, %v26, 0.0
  %34 = vadd.xlane.f32.xlu0 %v33
  %v35 = vpop.xlane.xlu0 %34
  %v36 = vsel %vm29, %v27, 0.0
  %37 = vadd.xlane.f32.xlu0 %v36
  %v38 = vpop.xlane.xlu0 %37
  %v39 = vsel %vm29, %v28, 0.0
  %40 = vadd.xlane.f32.xlu0 %v39
  %v41 = vpop.xlane.xlu0 %40
  %v42 = vmin.f32 %v17, %v21
  %v43 = vmin.f32 %v18, %v22
  %v44 = vmin.f32 %v19, %v23
  %v45 = vmin.f32 %v20, %v24
  %v46 = vsel %vm29, %v42, 0.0
  %47 = vadd.xlane.f32.xlu0 %v46
  %v48 = vpop.xlane.xlu0 %47
  %v49 = vsel %vm29, %v43, 0.0
  %50 = vadd.xlane.f32.xlu0 %v49
  %v51 = vpop.xlane.xlu0 %50
  %v52 = vsel %vm29, %v44, 0.0
  %53 = vadd.xlane.f32.xlu0 %v52
  %v54 = vpop.xlane.xlu0 %53
  %v55 = vsel %vm29, %v45, 0.0
  %56 = vadd.xlane.f32.xlu0 %v55
  %v57 = vpop.xlane.xlu0 %56
  %v58 = vrcp.pop %v48
  %v59 = vmul.f32 %v48, %v58
  %v60 = vsub.f32 1.0, %v59
  %v61 = vmul.f32 %v58, %v60
  %v62 = vadd.f32 %v58, %v61
  %vm63 = vweird.f32 %v48
  %vm64 = vweird.f32 %v58
  %vm65 = vmor %vm63, %vm64
  %v66 = vsel %vm65, %v58, %v62
  %v67 = vand.u32 2147483647, %v48
  %vm68 = vcmp.eq.f32.partialorder %v67, 8.507059e+37
  %v69 = vand.u32 %v48, 2147483648
  %v70 = vor.u32 1.1754944e-38, %v69
  %v71 = vsel %vm68, %v70, %v66
  %v72 = vmul.f32 %v32, %v71
  %v73 = vrcp.pop %v51
  %v74 = vmul.f32 %v51, %v73
  %v75 = vsub.f32 1.0, %v74
  %v76 = vmul.f32 %v73, %v75
  %v77 = vadd.f32 %v73, %v76
  %vm78 = vweird.f32 %v51
  %vm79 = vweird.f32 %v73
  %vm80 = vmor %vm78, %vm79
  %v81 = vsel %vm80, %v73, %v77
  %v82 = vand.u32 2147483647, %v51
  %vm83 = vcmp.eq.f32.partialorder %v82, 8.507059e+37
  %v84 = vand.u32 %v51, 2147483648
  %v85 = vor.u32 1.1754944e-38, %v84
  %v86 = vsel %vm83, %v85, %v81
  %v87 = vmul.f32 %v35, %v86
  %v88 = vrcp.pop %v54
  %v89 = vmul.f32 %v54, %v88
  %v90 = vsub.f32 1.0, %v89
  %v91 = vmul.f32 %v88, %v90
  %v92 = vadd.f32 %v88, %v91
  %vm93 = vweird.f32 %v54
  %vm94 = vweird.f32 %v88
  %vm95 = vmor %vm93, %vm94
  %v96 = vsel %vm95, %v88, %v92
  %v97 = vand.u32 2147483647, %v54
  %vm98 = vcmp.eq.f32.partialorder %v97, 8.507059e+37
  %v99 = vand.u32 %v54, 2147483648
  %v100 = vor.u32 1.1754944e-38, %v99
  %v101 = vsel %vm98, %v100, %v96
  %v102 = vmul.f32 %v38, %v101
  %v103 = vrcp.pop %v57
  %v104 = vmul.f32 %v57, %v103
  %v105 = vsub.f32 1.0, %v104
  %v106 = vmul.f32 %v103, %v105
  %v107 = vadd.f32 %v103, %v106
  %vm108 = vweird.f32 %v57
  %vm109 = vweird.f32 %v103
  %vm110 = vmor %vm108, %vm109
  %v111 = vsel %vm110, %v103, %v107
  %v112 = vand.u32 2147483647, %v57
  %vm113 = vcmp.eq.f32.partialorder %v112, 8.507059e+37
  %v114 = vand.u32 %v57, 2147483648
  %v115 = vor.u32 1.1754944e-38, %v114
  %v116 = vsel %vm113, %v115, %v111
  %v117 = vmul.f32 %v41, %v116
  %v118 = vlog2.pop %v72
  %v119 = vmul.f32 %v118, 0.6931472
  %v120 = vlog2.pop %v87
  %v121 = vmul.f32 %v120, 0.6931472
  %v122 = vlog2.pop %v102
  %v123 = vmul.f32 %v122, 0.6931472
  %v124 = vlog2.pop %v117
  %v125 = vmul.f32 %v124, 0.6931472
  %v126 = vld [vmem:[%s2] sm:$0xff]
  %v127 = vld [vmem:[%s2 + $0x8] sm:$0xff]
  %v128 = vld [vmem:[%s2 + $0x10] sm:$0xff]
  %v129 = vld [vmem:[%s2 + $0x18] sm:$0xff]
  %v130 = vunpack.c.l.bf16 %v126
  %v131 = vunpack.c.h.bf16 %v126
  %v132 = vunpack.c.l.bf16 %v127
  %v133 = vunpack.c.h.bf16 %v127
  %v134 = vunpack.c.l.bf16 %v128
  %v135 = vunpack.c.h.bf16 %v128
  %v136 = vunpack.c.l.bf16 %v129
  %v137 = vunpack.c.h.bf16 %v129
  %v138 = vld [vmem:[%s3] sm:$0xff]
  %v139 = vld [vmem:[%s3 + $0x8] sm:$0xff]
  %v140 = vld [vmem:[%s3 + $0x10] sm:$0xff]
  %v141 = vld [vmem:[%s3 + $0x18] sm:$0xff]
  %v142 = vunpack.c.l.bf16 %v138
  %v143 = vunpack.c.h.bf16 %v138
  %v144 = vunpack.c.l.bf16 %v139
  %v145 = vunpack.c.h.bf16 %v139
  %v146 = vunpack.c.l.bf16 %v140
  %v147 = vunpack.c.h.bf16 %v140
  %v148 = vunpack.c.l.bf16 %v141
  %v149 = vunpack.c.h.bf16 %v141
  %v150 = vmul.f32 %v130, %v142
  %v151 = vmul.f32 %v131, %v143
  %v152 = vmul.f32 %v132, %v144
  %v153 = vmul.f32 %v133, %v145
  %v154 = vmul.f32 %v134, %v146
  %v155 = vmul.f32 %v135, %v147
  %v156 = vmul.f32 %v136, %v148
  %v157 = vmul.f32 %v137, %v149
  %v158 = vadd.f32 %v150, %v151
  %159 = vadd.xlane.f32.xlu0 %v158
  %v160 = vpop.xlane.xlu0 %159
  %v161 = vadd.f32 %v152, %v153
  %162 = vadd.xlane.f32.xlu0 %v161
  %v163 = vpop.xlane.xlu0 %162
  %v164 = vadd.f32 %v154, %v155
  %165 = vadd.xlane.f32.xlu0 %v164
  %v166 = vpop.xlane.xlu0 %165
  %v167 = vadd.f32 %v156, %v157
  %168 = vadd.xlane.f32.xlu0 %v167
  %v169 = vpop.xlane.xlu0 %168
  %v170 = vadd.f32 %v130, %v131
  %171 = vadd.xlane.f32.xlu0 %v170
  %v172 = vpop.xlane.xlu0 %171
  %v173 = vadd.f32 %v132, %v133
  %174 = vadd.xlane.f32.xlu0 %v173
  %v175 = vpop.xlane.xlu0 %174
  %v176 = vadd.f32 %v134, %v135
  %177 = vadd.xlane.f32.xlu0 %v176
  %v178 = vpop.xlane.xlu0 %177
  %v179 = vadd.f32 %v136, %v137
  %180 = vadd.xlane.f32.xlu0 %v179
  %v181 = vpop.xlane.xlu0 %180
  %v182 = vadd.f32 %v142, %v143
  %183 = vadd.xlane.f32.xlu0 %v182
  %v184 = vpop.xlane.xlu0 %183
  %v185 = vadd.f32 %v144, %v145
  %186 = vadd.xlane.f32.xlu0 %v185
  %v187 = vpop.xlane.xlu0 %186
  %v188 = vadd.f32 %v146, %v147
  %189 = vadd.xlane.f32.xlu0 %v188
  %v190 = vpop.xlane.xlu0 %189
  %v191 = vadd.f32 %v148, %v149
  %192 = vadd.xlane.f32.xlu0 %v191
  %v193 = vpop.xlane.xlu0 %192
  %v194 = vmul.f32 %v160, 2.0
  %v195 = vmul.f32 %v163, 2.0
  %v196 = vmul.f32 %v166, 2.0
  %v197 = vmul.f32 %v169, 2.0
  %v198 = vadd.f32 %v194, 1.0
  %v199 = vadd.f32 %v195, 1.0
  %v200 = vadd.f32 %v196, 1.0
  %v201 = vadd.f32 %v197, 1.0
  %v202 = vadd.f32 %v172, %v184
  %v203 = vadd.f32 %v175, %v187
  %v204 = vadd.f32 %v178, %v190
  %v205 = vadd.f32 %v181, %v193
  %v206 = vadd.f32 %v202, 1.0
  %v207 = vadd.f32 %v203, 1.0
  %v208 = vadd.f32 %v204, 1.0
  %v209 = vadd.f32 %v205, 1.0
  %v210 = vrcp.pop %v206
  %v211 = vmul.f32 %v206, %v210
  %v212 = vsub.f32 1.0, %v211
  %v213 = vmul.f32 %v210, %v212
  %v214 = vadd.f32 %v210, %v213
  %vm215 = vweird.f32 %v206
  %vm216 = vweird.f32 %v210
  %vm217 = vmor %vm215, %vm216
  %v218 = vsel %vm217, %v210, %v214
  %v219 = vand.u32 2147483647, %v206
  %vm220 = vcmp.eq.f32.partialorder %v219, 8.507059e+37
  %v221 = vand.u32 %v206, 2147483648
  %v222 = vor.u32 1.1754944e-38, %v221
  %v223 = vsel %vm220, %v222, %v218
  %v224 = vmul.f32 %v198, %v223
  %v225 = vrcp.pop %v207
  %v226 = vmul.f32 %v207, %v225
  %v227 = vsub.f32 1.0, %v226
  %v228 = vmul.f32 %v225, %v227
  %v229 = vadd.f32 %v225, %v228
  %vm230 = vweird.f32 %v207
  %vm231 = vweird.f32 %v225
  %vm232 = vmor %vm230, %vm231
  %v233 = vsel %vm232, %v225, %v229
  %v234 = vand.u32 2147483647, %v207
  %vm235 = vcmp.eq.f32.partialorder %v234, 8.507059e+37
  %v236 = vand.u32 %v207, 2147483648
  %v237 = vor.u32 1.1754944e-38, %v236
  %v238 = vsel %vm235, %v237, %v233
  %v239 = vmul.f32 %v199, %v238
  %v240 = vrcp.pop %v208
  %v241 = vmul.f32 %v208, %v240
  %v242 = vsub.f32 1.0, %v241
  %v243 = vmul.f32 %v240, %v242
  %v244 = vadd.f32 %v240, %v243
  %vm245 = vweird.f32 %v208
  %vm246 = vweird.f32 %v240
  %vm247 = vmor %vm245, %vm246
  %v248 = vsel %vm247, %v240, %v244
  %v249 = vand.u32 2147483647, %v208
  %vm250 = vcmp.eq.f32.partialorder %v249, 8.507059e+37
  %v251 = vand.u32 %v208, 2147483648
  %v252 = vor.u32 1.1754944e-38, %v251
  %v253 = vsel %vm250, %v252, %v248
  %v254 = vmul.f32 %v200, %v253
  %v255 = vrcp.pop %v209
  %v256 = vmul.f32 %v209, %v255
  %v257 = vsub.f32 1.0, %v256
  %v258 = vmul.f32 %v255, %v257
  %v259 = vadd.f32 %v255, %v258
  %vm260 = vweird.f32 %v209
  %vm261 = vweird.f32 %v255
  %vm262 = vmor %vm260, %vm261
  %v263 = vsel %vm262, %v255, %v259
  %v264 = vand.u32 2147483647, %v209
  %vm265 = vcmp.eq.f32.partialorder %v264, 8.507059e+37
  %v266 = vand.u32 %v209, 2147483648
  %v267 = vor.u32 1.1754944e-38, %v266
  %v268 = vsel %vm265, %v267, %v263
  %v269 = vmul.f32 %v201, %v268
  %v270 = vsub.f32 1.0, %v224
  %v271 = vsub.f32 1.0, %v239
  %v272 = vsub.f32 1.0, %v254
  %v273 = vsub.f32 1.0, %v269
  %v274 = vadd.f32 %v119, %v270
  %v275 = vadd.f32 %v121, %v271
  %v276 = vadd.f32 %v123, %v272
  %v277 = vadd.f32 %v125, %v273
  %v278 = vlaneseq
  %v279 = vand.u32 %v278, 127
  %vm280 = vcmp.eq.s32.totalorder %v279, 0
  %v281 = vsel %vm280, %v274, 0.0
  %v282 = vsel %vm280, %v275, 0.0
  %v283 = vsel %vm280, %v276, 0.0
  %v284 = vsel %vm280, %v277, 0.0
  %285 = vst [vmem:[%s4] sm:$0xff] %v281
  %286 = vst [vmem:[%s4 + $0x8] sm:$0xff] %v282
  %287 = vst [vmem:[%s4 + $0x10] sm:$0xff] %v283
  %288 = vst [vmem:[%s4 + $0x18] sm:$0xff] %v284
  // Predicated region
  $region18: #{_match_costs_device.2} parent=0 // pred_check
    _
  $region19: #{_match_costs_device.2} parent=0 // pred_check_branch
    %290 = sbr.rel (0) target = $region21
  $region20: #{_match_costs_device.2} parent=0 // pred_region
    _
  $region21: #{_match_costs_device.2} parent=0 // pred_fallthru
    _
  // Predicated region
  $region22: #{_match_costs_device.2} parent=0 // pred_check
    _
  $region23: #{_match_costs_device.2} parent=0 // pred_check_branch
    %292 = sbr.rel (0) target = $region25
  $region24: #{_match_costs_device.2} parent=0 // pred_region
    _
  $region25: #{_match_costs_device.2} parent=0 // pred_fallthru
    _

// kernel: _match_costs_device.3
$region0: #{_match_costs_device.3}
  #allocation0 [shape = 'u32[]', space=smem, size = 0x4, offset = 0x4, fixed_abs, tag = 'smem constant byte address 0x4 - core index']
  #allocation1 [shape = 'u32[72,128]{1,0:T(1,128)}', space=vmem, size = 0x9000, scoped, tag = 'internal scratch']
  %s0 = inlined_call_operand.vmem [shape: f32[128,80], index: 0, kind: input, shape index: {}]
  %s1 = inlined_call_operand.vmem [shape: f32[128,80], index: 1, kind: input, shape index: {}]
  %s2 = inlined_call_operand.vmem [shape: f32[128,128], index: 2, kind: input, shape index: {}]
  %s3 = inlined_call_operand.vmem [shape: f32[128,128], index: 3, kind: output, shape index: {}]
  %s4 = sld [smem:[#allocation0]]
  $region22: #{_match_costs_device.3} parent=0
    _
  %s6 = ssub.s32 1, %s4
  %s7 = scalar_select 0, %s6, %s4
  // Predicated region
  $region2: #{_match_costs_device.3} parent=0 // pred_check
    _
  $region3: #{_match_costs_device.3} parent=0 // pred_check_branch
    %9 = sbr.rel (0) target = $region5
  $region4: #{_match_costs_device.3} parent=0 // pred_region
    _
  $region5: #{_match_costs_device.3} parent=0 // pred_fallthru
    _
  // Predicated region
  $region6: #{_match_costs_device.3} parent=0 // pred_check
    _
  $region7: #{_match_costs_device.3} parent=0 // pred_check_branch
    %11 = sbr.rel (0) target = $region9
  $region8: #{_match_costs_device.3} parent=0 // pred_region
    _
  $region9: #{_match_costs_device.3} parent=0 // pred_fallthru
    _
  // Predicated region
  $region10: #{_match_costs_device.3} parent=0 // pred_check
    _
  $region11: #{_match_costs_device.3} parent=0 // pred_check_branch
    %13 = sbr.rel (0) target = $region13
  $region12: #{_match_costs_device.3} parent=0 // pred_region
    _
  $region13: #{_match_costs_device.3} parent=0 // pred_fallthru
    _
  %v14 = vld [vmem:[%s0] sm:$0xff]
  %v15 = vld [vmem:[%s0 + $0x8] sm:$0xff]
  %v16 = vld [vmem:[%s0 + $0x10] sm:$0xff]
  %v17 = vld [vmem:[%s0 + $0x18] sm:$0xff]
  %v18 = vld [vmem:[%s0 + $0x20] sm:$0xff]
  %v19 = vld [vmem:[%s0 + $0x28] sm:$0xff]
  %v20 = vld [vmem:[%s0 + $0x30] sm:$0xff]
  %v21 = vld [vmem:[%s0 + $0x38] sm:$0xff]
  %v22 = vld [vmem:[%s0 + $0x40] sm:$0xff]
  %v23 = vld [vmem:[%s0 + $0x48] sm:$0xff]
  %v24 = vld [vmem:[%s0 + $0x50] sm:$0xff]
  %v25 = vld [vmem:[%s0 + $0x58] sm:$0xff]
  %v26 = vld [vmem:[%s0 + $0x60] sm:$0xff]
  %v27 = vld [vmem:[%s0 + $0x68] sm:$0xff]
  %v28 = vld [vmem:[%s0 + $0x70] sm:$0xff]
  %v29 = vld [vmem:[%s0 + $0x78] sm:$0xff]
  %v30 = vxor.u32 %v14, 2147483648
  %v31 = vxor.u32 %v15, 2147483648
  %v32 = vxor.u32 %v16, 2147483648
  %v33 = vxor.u32 %v17, 2147483648
  %v34 = vxor.u32 %v18, 2147483648
  %v35 = vxor.u32 %v19, 2147483648
  %v36 = vxor.u32 %v20, 2147483648
  %v37 = vxor.u32 %v21, 2147483648
  %v38 = vxor.u32 %v22, 2147483648
  %v39 = vxor.u32 %v23, 2147483648
  %v40 = vxor.u32 %v24, 2147483648
  %v41 = vxor.u32 %v25, 2147483648
  %v42 = vxor.u32 %v26, 2147483648
  %v43 = vxor.u32 %v27, 2147483648
  %v44 = vxor.u32 %v28, 2147483648
  %v45 = vxor.u32 %v29, 2147483648
  %v46 = vmul.f32 %v30, 1.442695
  %v47 = vpow.pop %v46
  %v48 = vmul.f32 %v31, 1.442695
  %v49 = vpow.pop %v48
  %v50 = vmul.f32 %v32, 1.442695
  %v51 = vpow.pop %v50
  %v52 = vmul.f32 %v33, 1.442695
  %v53 = vpow.pop %v52
  %v54 = vmul.f32 %v34, 1.442695
  %v55 = vpow.pop %v54
  %v56 = vmul.f32 %v35, 1.442695
  %v57 = vpow.pop %v56
  %v58 = vmul.f32 %v36, 1.442695
  %v59 = vpow.pop %v58
  %v60 = vmul.f32 %v37, 1.442695
  %v61 = vpow.pop %v60
  %v62 = vmul.f32 %v38, 1.442695
  %v63 = vpow.pop %v62
  %v64 = vmul.f32 %v39, 1.442695
  %v65 = vpow.pop %v64
  %v66 = vmul.f32 %v40, 1.442695
  %v67 = vpow.pop %v66
  %v68 = vmul.f32 %v41, 1.442695
  %v69 = vpow.pop %v68
  %v70 = vmul.f32 %v42, 1.442695
  %v71 = vpow.pop %v70
  %v72 = vmul.f32 %v43, 1.442695
  %v73 = vpow.pop %v72
  %v74 = vmul.f32 %v44, 1.442695
  %v75 = vpow.pop %v74
  %v76 = vmul.f32 %v45, 1.442695
  %v77 = vpow.pop %v76
  %v78 = vadd.f32 %v47, 1.0
  %v79 = vadd.f32 %v49, 1.0
  %v80 = vadd.f32 %v51, 1.0
  %v81 = vadd.f32 %v53, 1.0
  %v82 = vadd.f32 %v55, 1.0
  %v83 = vadd.f32 %v57, 1.0
  %v84 = vadd.f32 %v59, 1.0
  %v85 = vadd.f32 %v61, 1.0
  %v86 = vadd.f32 %v63, 1.0
  %v87 = vadd.f32 %v65, 1.0
  %v88 = vadd.f32 %v67, 1.0
  %v89 = vadd.f32 %v69, 1.0
  %v90 = vadd.f32 %v71, 1.0
  %v91 = vadd.f32 %v73, 1.0
  %v92 = vadd.f32 %v75, 1.0
  %v93 = vadd.f32 %v77, 1.0
  %v94 = vrcp.pop %v78
  %v95 = vmul.f32 %v78, %v94
  %v96 = vsub.f32 1.0, %v95
  %v97 = vmul.f32 %v94, %v96
  %v98 = vadd.f32 %v94, %v97
  %vm99 = vweird.f32 %v78
  %vm100 = vweird.f32 %v94
  %vm101 = vmor %vm99, %vm100
  %v102 = vsel %vm101, %v94, %v98
  %v103 = vand.u32 2147483647, %v78
  %vm104 = vcmp.eq.f32.partialorder %v103, 8.507059e+37
  %v105 = vand.u32 %v78, 2147483648
  %v106 = vor.u32 1.1754944e-38, %v105
  %v107 = vsel %vm104, %v106, %v102
  %v108 = vmul.f32 1.0, %v107
  %v109 = vrcp.pop %v79
  %v110 = vmul.f32 %v79, %v109
  %v111 = vsub.f32 1.0, %v110
  %v112 = vmul.f32 %v109, %v111
  %v113 = vadd.f32 %v109, %v112
  %vm114 = vweird.f32 %v79
  %vm115 = vweird.f32 %v109
  %vm116 = vmor %vm114, %vm115
  %v117 = vsel %vm116, %v109, %v113
  %v118 = vand.u32 2147483647, %v79
  %vm119 = vcmp.eq.f32.partialorder %v118, 8.507059e+37
  %v120 = vand.u32 %v79, 2147483648
  %v121 = vor.u32 1.1754944e-38, %v120
  %v122 = vsel %vm119, %v121, %v117
  %v123 = vmul.f32 1.0, %v122
  %v124 = vrcp.pop %v80
  %v125 = vmul.f32 %v80, %v124
  %v126 = vsub.f32 1.0, %v125
  %v127 = vmul.f32 %v124, %v126
  %v128 = vadd.f32 %v124, %v127
  %vm129 = vweird.f32 %v80
  %vm130 = vweird.f32 %v124
  %vm131 = vmor %vm129, %vm130
  %v132 = vsel %vm131, %v124, %v128
  %v133 = vand.u32 2147483647, %v80
  %vm134 = vcmp.eq.f32.partialorder %v133, 8.507059e+37
  %v135 = vand.u32 %v80, 2147483648
  %v136 = vor.u32 1.1754944e-38, %v135
  %v137 = vsel %vm134, %v136, %v132
  %v138 = vmul.f32 1.0, %v137
  %v139 = vrcp.pop %v81
  %v140 = vmul.f32 %v81, %v139
  %v141 = vsub.f32 1.0, %v140
  %v142 = vmul.f32 %v139, %v141
  %v143 = vadd.f32 %v139, %v142
  %vm144 = vweird.f32 %v81
  %vm145 = vweird.f32 %v139
  %vm146 = vmor %vm144, %vm145
  %v147 = vsel %vm146, %v139, %v143
  %v148 = vand.u32 2147483647, %v81
  %vm149 = vcmp.eq.f32.partialorder %v148, 8.507059e+37
  %v150 = vand.u32 %v81, 2147483648
  %v151 = vor.u32 1.1754944e-38, %v150
  %v152 = vsel %vm149, %v151, %v147
  %v153 = vmul.f32 1.0, %v152
  %v154 = vrcp.pop %v82
  %v155 = vmul.f32 %v82, %v154
  %v156 = vsub.f32 1.0, %v155
  %v157 = vmul.f32 %v154, %v156
  %v158 = vadd.f32 %v154, %v157
  %vm159 = vweird.f32 %v82
  %vm160 = vweird.f32 %v154
  %vm161 = vmor %vm159, %vm160
  %v162 = vsel %vm161, %v154, %v158
  %v163 = vand.u32 2147483647, %v82
  %vm164 = vcmp.eq.f32.partialorder %v163, 8.507059e+37
  %v165 = vand.u32 %v82, 2147483648
  %v166 = vor.u32 1.1754944e-38, %v165
  %v167 = vsel %vm164, %v166, %v162
  %v168 = vmul.f32 1.0, %v167
  %v169 = vrcp.pop %v83
  %v170 = vmul.f32 %v83, %v169
  %v171 = vsub.f32 1.0, %v170
  %v172 = vmul.f32 %v169, %v171
  %v173 = vadd.f32 %v169, %v172
  %vm174 = vweird.f32 %v83
  %vm175 = vweird.f32 %v169
  %vm176 = vmor %vm174, %vm175
  %v177 = vsel %vm176, %v169, %v173
  %v178 = vand.u32 2147483647, %v83
  %vm179 = vcmp.eq.f32.partialorder %v178, 8.507059e+37
  %v180 = vand.u32 %v83, 2147483648
  %v181 = vor.u32 1.1754944e-38, %v180
  %v182 = vsel %vm179, %v181, %v177
  %v183 = vmul.f32 1.0, %v182
  %v184 = vrcp.pop %v84
  %v185 = vmul.f32 %v84, %v184
  %v186 = vsub.f32 1.0, %v185
  %v187 = vmul.f32 %v184, %v186
  %v188 = vadd.f32 %v184, %v187
  %vm189 = vweird.f32 %v84
  %vm190 = vweird.f32 %v184
  %vm191 = vmor %vm189, %vm190
  %v192 = vsel %vm191, %v184, %v188
  %v193 = vand.u32 2147483647, %v84
  %vm194 = vcmp.eq.f32.partialorder %v193, 8.507059e+37
  %v195 = vand.u32 %v84, 2147483648
  %v196 = vor.u32 1.1754944e-38, %v195
  %v197 = vsel %vm194, %v196, %v192
  %v198 = vmul.f32 1.0, %v197
  %v199 = vrcp.pop %v85
  %v200 = vmul.f32 %v85, %v199
  %v201 = vsub.f32 1.0, %v200
  %v202 = vmul.f32 %v199, %v201
  %v203 = vadd.f32 %v199, %v202
  %vm204 = vweird.f32 %v85
  %vm205 = vweird.f32 %v199
  %vm206 = vmor %vm204, %vm205
  %v207 = vsel %vm206, %v199, %v203
  %v208 = vand.u32 2147483647, %v85
  %vm209 = vcmp.eq.f32.partialorder %v208, 8.507059e+37
  %v210 = vand.u32 %v85, 2147483648
  %v211 = vor.u32 1.1754944e-38, %v210
  %v212 = vsel %vm209, %v211, %v207
  %v213 = vmul.f32 1.0, %v212
  %v214 = vrcp.pop %v86
  %v215 = vmul.f32 %v86, %v214
  %v216 = vsub.f32 1.0, %v215
  %v217 = vmul.f32 %v214, %v216
  %v218 = vadd.f32 %v214, %v217
  %vm219 = vweird.f32 %v86
  %vm220 = vweird.f32 %v214
  %vm221 = vmor %vm219, %vm220
  %v222 = vsel %vm221, %v214, %v218
  %v223 = vand.u32 2147483647, %v86
  %vm224 = vcmp.eq.f32.partialorder %v223, 8.507059e+37
  %v225 = vand.u32 %v86, 2147483648
  %v226 = vor.u32 1.1754944e-38, %v225
  %v227 = vsel %vm224, %v226, %v222
  %v228 = vmul.f32 1.0, %v227
  %v229 = vrcp.pop %v87
  %v230 = vmul.f32 %v87, %v229
  %v231 = vsub.f32 1.0, %v230
  %v232 = vmul.f32 %v229, %v231
  %v233 = vadd.f32 %v229, %v232
  %vm234 = vweird.f32 %v87
  %vm235 = vweird.f32 %v229
  %vm236 = vmor %vm234, %vm235
  %v237 = vsel %vm236, %v229, %v233
  %v238 = vand.u32 2147483647, %v87
  %vm239 = vcmp.eq.f32.partialorder %v238, 8.507059e+37
  %v240 = vand.u32 %v87, 2147483648
  %v241 = vor.u32 1.1754944e-38, %v240
  %v242 = vsel %vm239, %v241, %v237
  %v243 = vmul.f32 1.0, %v242
  %v244 = vrcp.pop %v88
  %v245 = vmul.f32 %v88, %v244
  %v246 = vsub.f32 1.0, %v245
  %v247 = vmul.f32 %v244, %v246
  %v248 = vadd.f32 %v244, %v247
  %vm249 = vweird.f32 %v88
  %vm250 = vweird.f32 %v244
  %vm251 = vmor %vm249, %vm250
  %v252 = vsel %vm251, %v244, %v248
  %v253 = vand.u32 2147483647, %v88
  %vm254 = vcmp.eq.f32.partialorder %v253, 8.507059e+37
  %v255 = vand.u32 %v88, 2147483648
  %v256 = vor.u32 1.1754944e-38, %v255
  %v257 = vsel %vm254, %v256, %v252
  %v258 = vmul.f32 1.0, %v257
  %v259 = vrcp.pop %v89
  %v260 = vmul.f32 %v89, %v259
  %v261 = vsub.f32 1.0, %v260
  %v262 = vmul.f32 %v259, %v261
  %v263 = vadd.f32 %v259, %v262
  %vm264 = vweird.f32 %v89
  %vm265 = vweird.f32 %v259
  %vm266 = vmor %vm264, %vm265
  %v267 = vsel %vm266, %v259, %v263
  %v268 = vand.u32 2147483647, %v89
  %vm269 = vcmp.eq.f32.partialorder %v268, 8.507059e+37
  %v270 = vand.u32 %v89, 2147483648
  %v271 = vor.u32 1.1754944e-38, %v270
  %v272 = vsel %vm269, %v271, %v267
  %v273 = vmul.f32 1.0, %v272
  %v274 = vrcp.pop %v90
  %v275 = vmul.f32 %v90, %v274
  %v276 = vsub.f32 1.0, %v275
  %v277 = vmul.f32 %v274, %v276
  %v278 = vadd.f32 %v274, %v277
  %vm279 = vweird.f32 %v90
  %vm280 = vweird.f32 %v274
  %vm281 = vmor %vm279, %vm280
  %v282 = vsel %vm281, %v274, %v278
  %v283 = vand.u32 2147483647, %v90
  %vm284 = vcmp.eq.f32.partialorder %v283, 8.507059e+37
  %v285 = vand.u32 %v90, 2147483648
  %v286 = vor.u32 1.1754944e-38, %v285
  %v287 = vsel %vm284, %v286, %v282
  %v288 = vmul.f32 1.0, %v287
  %v289 = vrcp.pop %v91
  %v290 = vmul.f32 %v91, %v289
  %v291 = vsub.f32 1.0, %v290
  %v292 = vmul.f32 %v289, %v291
  %v293 = vadd.f32 %v289, %v292
  %vm294 = vweird.f32 %v91
  %vm295 = vweird.f32 %v289
  %vm296 = vmor %vm294, %vm295
  %v297 = vsel %vm296, %v289, %v293
  %v298 = vand.u32 2147483647, %v91
  %vm299 = vcmp.eq.f32.partialorder %v298, 8.507059e+37
  %v300 = vand.u32 %v91, 2147483648
  %v301 = vor.u32 1.1754944e-38, %v300
  %v302 = vsel %vm299, %v301, %v297
  %v303 = vmul.f32 1.0, %v302
  %v304 = vrcp.pop %v92
  %v305 = vmul.f32 %v92, %v304
  %v306 = vsub.f32 1.0, %v305
  %v307 = vmul.f32 %v304, %v306
  %v308 = vadd.f32 %v304, %v307
  %vm309 = vweird.f32 %v92
  %vm310 = vweird.f32 %v304
  %vm311 = vmor %vm309, %vm310
  %v312 = vsel %vm311, %v304, %v308
  %v313 = vand.u32 2147483647, %v92
  %vm314 = vcmp.eq.f32.partialorder %v313, 8.507059e+37
  %v315 = vand.u32 %v92, 2147483648
  %v316 = vor.u32 1.1754944e-38, %v315
  %v317 = vsel %vm314, %v316, %v312
  %v318 = vmul.f32 1.0, %v317
  %v319 = vrcp.pop %v93
  %v320 = vmul.f32 %v93, %v319
  %v321 = vsub.f32 1.0, %v320
  %v322 = vmul.f32 %v319, %v321
  %v323 = vadd.f32 %v319, %v322
  %vm324 = vweird.f32 %v93
  %vm325 = vweird.f32 %v319
  %vm326 = vmor %vm324, %vm325
  %v327 = vsel %vm326, %v319, %v323
  %v328 = vand.u32 2147483647, %v93
  %vm329 = vcmp.eq.f32.partialorder %v328, 8.507059e+37
  %v330 = vand.u32 %v93, 2147483648
  %v331 = vor.u32 1.1754944e-38, %v330
  %v332 = vsel %vm329, %v331, %v327
  %v333 = vmul.f32 1.0, %v332
  %v334 = vmul.f32 %v108, %v108
  %v335 = vmul.f32 %v123, %v123
  %v336 = vmul.f32 %v138, %v138
  %v337 = vmul.f32 %v153, %v153
  %v338 = vmul.f32 %v168, %v168
  %v339 = vmul.f32 %v183, %v183
  %v340 = vmul.f32 %v198, %v198
  %v341 = vmul.f32 %v213, %v213
  %v342 = vmul.f32 %v228, %v228
  %v343 = vmul.f32 %v243, %v243
  %v344 = vmul.f32 %v258, %v258
  %v345 = vmul.f32 %v273, %v273
  %v346 = vmul.f32 %v288, %v288
  %v347 = vmul.f32 %v303, %v303
  %v348 = vmul.f32 %v318, %v318
  %v349 = vmul.f32 %v333, %v333
  %v350 = vmul.f32 %v334, 0.75
  %v351 = vmul.f32 %v335, 0.75
  %v352 = vmul.f32 %v336, 0.75
  %v353 = vmul.f32 %v337, 0.75
  %v354 = vmul.f32 %v338, 0.75
  %v355 = vmul.f32 %v339, 0.75
  %v356 = vmul.f32 %v340, 0.75
  %v357 = vmul.f32 %v341, 0.75
  %v358 = vmul.f32 %v342, 0.75
  %v359 = vmul.f32 %v343, 0.75
  %v360 = vmul.f32 %v344, 0.75
  %v361 = vmul.f32 %v345, 0.75
  %v362 = vmul.f32 %v346, 0.75
  %v363 = vmul.f32 %v347, 0.75
  %v364 = vmul.f32 %v348, 0.75
  %v365 = vmul.f32 %v349, 0.75
  %v366 = vsub.f32 1.0, %v108
  %v367 = vsub.f32 1.0, %v123
  %v368 = vsub.f32 1.0, %v138
  %v369 = vsub.f32 1.0, %v153
  %v370 = vsub.f32 1.0, %v168
  %v371 = vsub.f32 1.0, %v183
  %v372 = vsub.f32 1.0, %v198
  %v373 = vsub.f32 1.0, %v213
  %v374 = vsub.f32 1.0, %v228
  %v375 = vsub.f32 1.0, %v243
  %v376 = vsub.f32 1.0, %v258
  %v377 = vsub.f32 1.0, %v273
  %v378 = vsub.f32 1.0, %v288
  %v379 = vsub.f32 1.0, %v303
  %v380 = vsub.f32 1.0, %v318
  %v381 = vsub.f32 1.0, %v333
  %v382 = vadd.f32 %v366, 1e-08
  %v383 = vadd.f32 %v367, 1e-08
  %v384 = vadd.f32 %v368, 1e-08
  %v385 = vadd.f32 %v369, 1e-08
  %v386 = vadd.f32 %v370, 1e-08
  %v387 = vadd.f32 %v371, 1e-08
  %v388 = vadd.f32 %v372, 1e-08
  %v389 = vadd.f32 %v373, 1e-08
  %v390 = vadd.f32 %v374, 1e-08
  %v391 = vadd.f32 %v375, 1e-08
  %v392 = vadd.f32 %v376, 1e-08
  %v393 = vadd.f32 %v377, 1e-08
  %v394 = vadd.f32 %v378, 1e-08
  %v395 = vadd.f32 %v379, 1e-08
  %v396 = vadd.f32 %v380, 1e-08
  %v397 = vadd.f32 %v381, 1e-08
  %v398 = vlog2.pop %v382
  %v399 = vmul.f32 %v398, 0.6931472
  %v400 = vlog2.pop %v383
  %v401 = vmul.f32 %v400, 0.6931472
  %v402 = vlog2.pop %v384
  %v403 = vmul.f32 %v402, 0.6931472
  %v404 = vlog2.pop %v385
  %v405 = vmul.f32 %v404, 0.6931472
  %v406 = vlog2.pop %v386
  %v407 = vmul.f32 %v406, 0.6931472
  %v408 = vlog2.pop %v387
  %v409 = vmul.f32 %v408, 0.6931472
  %v410 = vlog2.pop %v388
  %v411 = vmul.f32 %v410, 0.6931472
  %v412 = vlog2.pop %v389
  %v413 = vmul.f32 %v412, 0.6931472
  %v414 = vlog2.pop %v390
  %v415 = vmul.f32 %v414, 0.6931472
  %v416 = vlog2.pop %v391
  %v417 = vmul.f32 %v416, 0.6931472
  %v418 = vlog2.pop %v392
  %v419 = vmul.f32 %v418, 0.6931472
  %v420 = vlog2.pop %v393
  %v421 = vmul.f32 %v420, 0.6931472
  %v422 = vlog2.pop %v394
  %v423 = vmul.f32 %v422, 0.6931472
  %v424 = vlog2.pop %v395
  %v425 = vmul.f32 %v424, 0.6931472
  %v426 = vlog2.pop %v396
  %v427 = vmul.f32 %v426, 0.6931472
  %v428 = vlog2.pop %v397
  %v429 = vmul.f32 %v428, 0.6931472
  %v430 = vsub.f32 0.0, %v399
  %v431 = vsub.f32 0.0, %v401
  %v432 = vsub.f32 0.0, %v403
  %v433 = vsub.f32 0.0, %v405
  %v434 = vsub.f32 0.0, %v407
  %v435 = vsub.f32 0.0, %v409
  %v436 = vsub.f32 0.0, %v411
  %v437 = vsub.f32 0.0, %v413
  %v438 = vsub.f32 0.0, %v415
  %v439 = vsub.f32 0.0, %v417
  %v440 = vsub.f32 0.0, %v419
  %v441 = vsub.f32 0.0, %v421
  %v442 = vsub.f32 0.0, %v423
  %v443 = vsub.f32 0.0, %v425
  %v444 = vsub.f32 0.0, %v427
  %v445 = vsub.f32 0.0, %v429
  %v446 = vmul.f32 %v350, %v430
  %v447 = vmul.f32 %v351, %v431
  %v448 = vmul.f32 %v352, %v432
  %v449 = vmul.f32 %v353, %v433
  %v450 = vmul.f32 %v354, %v434
  %v451 = vmul.f32 %v355, %v435
  %v452 = vmul.f32 %v356, %v436
  %v453 = vmul.f32 %v357, %v437
  %v454 = vmul.f32 %v358, %v438
  %v455 = vmul.f32 %v359, %v439
  %v456 = vmul.f32 %v360, %v440
  %v457 = vmul.f32 %v361, %v441
  %v458 = vmul.f32 %v362, %v442
  %v459 = vmul.f32 %v363, %v443
  %v460 = vmul.f32 %v364, %v444
  %v461 = vmul.f32 %v365, %v445
  %v462 = vmul.f32 %v366, %v366
  %v463 = vmul.f32 %v367, %v367
  %v464 = vmul.f32 %v368, %v368
  %v465 = vmul.f32 %v369, %v369
  %v466 = vmul.f32 %v370, %v370
  %v467 = vmul.f32 %v371, %v371
  %v468 = vmul.f32 %v372, %v372
  %v469 = vmul.f32 %v373, %v373
  %v470 = vmul.f32 %v374, %v374
  %v471 = vmul.f32 %v375, %v375
  %v472 = vmul.f32 %v376, %v376
  %v473 = vmul.f32 %v377, %v377
  %v474 = vmul.f32 %v378, %v378
  %v475 = vmul.f32 %v379, %v379
  %v476 = vmul.f32 %v380, %v380
  %v477 = vmul.f32 %v381, %v381
  %v478 = vmul.f32 %v462, 0.25
  %v479 = vmul.f32 %v463, 0.25
  %v480 = vmul.f32 %v464, 0.25
  %v481 = vmul.f32 %v465, 0.25
  %v482 = vmul.f32 %v466, 0.25
  %v483 = vmul.f32 %v467, 0.25
  %v484 = vmul.f32 %v468, 0.25
  %v485 = vmul.f32 %v469, 0.25
  %v486 = vmul.f32 %v470, 0.25
  %v487 = vmul.f32 %v471, 0.25
  %v488 = vmul.f32 %v472, 0.25
  %v489 = vmul.f32 %v473, 0.25
  %v490 = vmul.f32 %v474, 0.25
  %v491 = vmul.f32 %v475, 0.25
  %v492 = vmul.f32 %v476, 0.25
  %v493 = vmul.f32 %v477, 0.25
  %v494 = vadd.f32 %v108, 1e-08
  %v495 = vadd.f32 %v123, 1e-08
  %v496 = vadd.f32 %v138, 1e-08
  %v497 = vadd.f32 %v153, 1e-08
  %v498 = vadd.f32 %v168, 1e-08
  %v499 = vadd.f32 %v183, 1e-08
  %v500 = vadd.f32 %v198, 1e-08
  %v501 = vadd.f32 %v213, 1e-08
  %v502 = vadd.f32 %v228, 1e-08
  %v503 = vadd.f32 %v243, 1e-08
  %v504 = vadd.f32 %v258, 1e-08
  %v505 = vadd.f32 %v273, 1e-08
  %v506 = vadd.f32 %v288, 1e-08
  %v507 = vadd.f32 %v303, 1e-08
  %v508 = vadd.f32 %v318, 1e-08
  %v509 = vadd.f32 %v333, 1e-08
  %v510 = vlog2.pop %v494
  %v511 = vmul.f32 %v510, 0.6931472
  %v512 = vlog2.pop %v495
  %v513 = vmul.f32 %v512, 0.6931472
  %v514 = vlog2.pop %v496
  %v515 = vmul.f32 %v514, 0.6931472
  %v516 = vlog2.pop %v497
  %v517 = vmul.f32 %v516, 0.6931472
  %v518 = vlog2.pop %v498
  %v519 = vmul.f32 %v518, 0.6931472
  %v520 = vlog2.pop %v499
  %v521 = vmul.f32 %v520, 0.6931472
  %v522 = vlog2.pop %v500
  %v523 = vmul.f32 %v522, 0.6931472
  %v524 = vlog2.pop %v501
  %v525 = vmul.f32 %v524, 0.6931472
  %v526 = vlog2.pop %v502
  %v527 = vmul.f32 %v526, 0.6931472
  %v528 = vlog2.pop %v503
  %v529 = vmul.f32 %v528, 0.6931472
  %v530 = vlog2.pop %v504
  %v531 = vmul.f32 %v530, 0.6931472
  %v532 = vlog2.pop %v505
  %v533 = vmul.f32 %v532, 0.6931472
  %v534 = vlog2.pop %v506
  %v535 = vmul.f32 %v534, 0.6931472
  %v536 = vlog2.pop %v507
  %v537 = vmul.f32 %v536, 0.6931472
  %v538 = vlog2.pop %v508
  %v539 = vmul.f32 %v538, 0.6931472
  %v540 = vlog2.pop %v509
  %v541 = vmul.f32 %v540, 0.6931472
  %v542 = vsub.f32 0.0, %v511
  %v543 = vsub.f32 0.0, %v513
  %v544 = vsub.f32 0.0, %v515
  %v545 = vsub.f32 0.0, %v517
  %v546 = vsub.f32 0.0, %v519
  %v547 = vsub.f32 0.0, %v521
  %v548 = vsub.f32 0.0, %v523
  %v549 = vsub.f32 0.0, %v525
  %v550 = vsub.f32 0.0, %v527
  %v551 = vsub.f32 0.0, %v529
  %v552 = vsub.f32 0.0, %v531
  %v553 = vsub.f32 0.0, %v533
  %v554 = vsub.f32 0.0, %v535
  %v555 = vsub.f32 0.0, %v537
  %v556 = vsub.f32 0.0, %v539
  %v557 = vsub.f32 0.0, %v541
  %v558 = vmul.f32 %v478, %v542
  %v559 = vmul.f32 %v479, %v543
  %v560 = vmul.f32 %v480, %v544
  %v561 = vmul.f32 %v481, %v545
  %v562 = vmul.f32 %v482, %v546
  %v563 = vmul.f32 %v483, %v547
  %v564 = vmul.f32 %v484, %v548
  %v565 = vmul.f32 %v485, %v549
  %v566 = vmul.f32 %v486, %v550
  %v567 = vmul.f32 %v487, %v551
  %v568 = vmul.f32 %v488, %v552
  %v569 = vmul.f32 %v489, %v553
  %v570 = vmul.f32 %v490, %v554
  %v571 = vmul.f32 %v491, %v555
  %v572 = vmul.f32 %v492, %v556
  %v573 = vmul.f32 %v493, %v557
  %v574 = vsub.f32 %v558, %v446
  %v575 = vsub.f32 %v559, %v447
  %v576 = vsub.f32 %v560, %v448
  %v577 = vsub.f32 %v561, %v449
  %v578 = vsub.f32 %v562, %v450
  %v579 = vsub.f32 %v563, %v451
  %v580 = vsub.f32 %v564, %v452
  %v581 = vsub.f32 %v565, %v453
  %v582 = vsub.f32 %v566, %v454
  %v583 = vsub.f32 %v567, %v455
  %v584 = vsub.f32 %v568, %v456
  %v585 = vsub.f32 %v569, %v457
  %v586 = vsub.f32 %v570, %v458
  %v587 = vsub.f32 %v571, %v459
  %v588 = vsub.f32 %v572, %v460
  %v589 = vsub.f32 %v573, %v461
  %v590 = vld [vmem:[%s1] sm:$0xff]
  %v591 = vld [vmem:[%s1 + $0x8] sm:$0xff]
  %v592 = vld [vmem:[%s1 + $0x10] sm:$0xff]
  %v593 = vld [vmem:[%s1 + $0x18] sm:$0xff]
  %v594 = vld [vmem:[%s1 + $0x20] sm:$0xff]
  %v595 = vld [vmem:[%s1 + $0x28] sm:$0xff]
  %v596 = vld [vmem:[%s1 + $0x30] sm:$0xff]
  %v597 = vld [vmem:[%s1 + $0x38] sm:$0xff]
  %v598 = vld [vmem:[%s1 + $0x40] sm:$0xff]
  %v599 = vld [vmem:[%s1 + $0x48] sm:$0xff]
  %v600 = vld [vmem:[%s1 + $0x50] sm:$0xff]
  %v601 = vld [vmem:[%s1 + $0x58] sm:$0xff]
  %v602 = vld [vmem:[%s1 + $0x60] sm:$0xff]
  %v603 = vld [vmem:[%s1 + $0x68] sm:$0xff]
  %v604 = vld [vmem:[%s1 + $0x70] sm:$0xff]
  %v605 = vld [vmem:[%s1 + $0x78] sm:$0xff]
  %v606 = vld [vmem:[%s2] sm:$0xff]
  %v607 = vld [vmem:[%s2 + $0x8] sm:$0xff]
  %v608 = vld [vmem:[%s2 + $0x10] sm:$0xff]
  %v609 = vld [vmem:[%s2 + $0x18] sm:$0xff]
  %v610 = vld [vmem:[%s2 + $0x20] sm:$0xff]
  %v611 = vld [vmem:[%s2 + $0x28] sm:$0xff]
  %v612 = vld [vmem:[%s2 + $0x30] sm:$0xff]
  %v613 = vld [vmem:[%s2 + $0x38] sm:$0xff]
  %v614 = vld [vmem:[%s2 + $0x40] sm:$0xff]
  %v615 = vld [vmem:[%s2 + $0x48] sm:$0xff]
  %v616 = vld [vmem:[%s2 + $0x50] sm:$0xff]
  %v617 = vld [vmem:[%s2 + $0x58] sm:$0xff]
  %v618 = vld [vmem:[%s2 + $0x60] sm:$0xff]
  %v619 = vld [vmem:[%s2 + $0x68] sm:$0xff]
  %v620 = vld [vmem:[%s2 + $0x70] sm:$0xff]
  %v621 = vld [vmem:[%s2 + $0x78] sm:$0xff]
  %vm622 = vcmask 654336
  %v624 = vsel %vm622, %v590, 0
  %v627 = vsel %vm622, %v591, 0
  %v630 = vsel %vm622, %v592, 0
  %v633 = vsel %vm622, %v593, 0
  %v636 = vsel %vm622, %v594, 0
  %v639 = vsel %vm622, %v595, 0
  %v642 = vsel %vm622, %v596, 0
  %v645 = vsel %vm622, %v597, 0
  %v648 = vsel %vm622, %v598, 0
  %v651 = vsel %vm622, %v599, 0
  %v654 = vsel %vm622, %v600, 0
  %v657 = vsel %vm622, %v601, 0
  %v660 = vsel %vm622, %v602, 0
  %v663 = vsel %vm622, %v603, 0
  %v666 = vsel %vm622, %v604, 0
  %v669 = vsel %vm622, %v605, 0
  %v672 = vsel %vm622, %v574, 0
  %v675 = vsel %vm622, %v575, 0
  %v678 = vsel %vm622, %v576, 0
  %v681 = vsel %vm622, %v577, 0
  %v684 = vsel %vm622, %v578, 0
  %v687 = vsel %vm622, %v579, 0
  %v690 = vsel %vm622, %v580, 0
  %v693 = vsel %vm622, %v581, 0
  %v696 = vsel %vm622, %v582, 0
  %v699 = vsel %vm622, %v583, 0
  %v702 = vsel %vm622, %v584, 0
  %v705 = vsel %vm622, %v585, 0
  %v708 = vsel %vm622, %v586, 0
  %v711 = vsel %vm622, %v587, 0
  %v714 = vsel %vm622, %v588, 0
  %v717 = vsel %vm622, %v589, 0
  %719 = vmatpush.xpose.msra.mxu0 %v717
  %720 = vmatpush.xpose.msra.mxu0 %v714
  %721 = vmatpush.xpose.msra.mxu0 %v711
  %722 = vmatpush.xpose.msra.mxu0 %v708
  %723 = vmatpush.xpose.msra.mxu0 %v705
  %724 = vmatpush.xpose.msra.mxu0 %v702
  %725 = vmatpush.xpose.msra.mxu0 %v699
  %726 = vmatpush.xpose.msra.mxu0 %v696
  %727 = vmatpush.xpose.msra.mxu0 %v693
  %728 = vmatpush.xpose.msra.mxu0 %v690
  %729 = vmatpush.xpose.msra.mxu0 %v687
  %730 = vmatpush.xpose.msra.mxu0 %v684
  %731 = vmatpush.xpose.msra.mxu0 %v681
  %732 = vmatpush.xpose.msra.mxu0 %v678
  %733 = vmatpush.xpose.msra.mxu0 %v675
  %734 = vmatpush.xpose.msra.mxu0 %v672
  %735 = vmatmul.f32.gmra.mxu0 %v624
  %v736 = vpop.f32.mrf.mxu0
  %v737 = vadd.f32 %v606, %v736
  %738 = vmatmul.f32.gmra.mxu0 %v627
  %v739 = vpop.f32.mrf.mxu0
  %v740 = vadd.f32 %v607, %v739
  %741 = vmatmul.f32.gmra.mxu0 %v630
  %v742 = vpop.f32.mrf.mxu0
  %v743 = vadd.f32 %v608, %v742
  %744 = vmatmul.f32.gmra.mxu0 %v633
  %v745 = vpop.f32.mrf.mxu0
  %v746 = vadd.f32 %v609, %v745
  %747 = vmatmul.f32.gmra.mxu0 %v636
  %v748 = vpop.f32.mrf.mxu0
  %v749 = vadd.f32 %v610, %v748
  %750 = vmatmul.f32.gmra.mxu0 %v639
  %v751 = vpop.f32.mrf.mxu0
  %v752 = vadd.f32 %v611, %v751
  %753 = vmatmul.f32.gmra.mxu0 %v642
  %v754 = vpop.f32.mrf.mxu0
  %v755 = vadd.f32 %v612, %v754
  %756 = vmatmul.f32.gmra.mxu0 %v645
  %v757 = vpop.f32.mrf.mxu0
  %v758 = vadd.f32 %v613, %v757
  %759 = vmatmul.f32.gmra.mxu0 %v648
  %v760 = vpop.f32.mrf.mxu0
  %v761 = vadd.f32 %v614, %v760
  %762 = vmatmul.f32.gmra.mxu0 %v651
  %v763 = vpop.f32.mrf.mxu0
  %v764 = vadd.f32 %v615, %v763
  %765 = vmatmul.f32.gmra.mxu0 %v654
  %v766 = vpop.f32.mrf.mxu0
  %v767 = vadd.f32 %v616, %v766
  %768 = vmatmul.f32.gmra.mxu0 %v657
  %v769 = vpop.f32.mrf.mxu0
  %v770 = vadd.f32 %v617, %v769
  %771 = vmatmul.f32.gmra.mxu0 %v660
  %v772 = vpop.f32.mrf.mxu0
  %v773 = vadd.f32 %v618, %v772
  %774 = vmatmul.f32.gmra.mxu0 %v663
  %v775 = vpop.f32.mrf.mxu0
  %v776 = vadd.f32 %v619, %v775
  %777 = vmatmul.f32.gmra.mxu0 %v666
  %v778 = vpop.f32.mrf.mxu0
  %v779 = vadd.f32 %v620, %v778
  %780 = vmatmul.f32.gmra.mxu0 %v669
  %v781 = vpop.f32.mrf.mxu0
  %v782 = vadd.f32 %v621, %v781
  %783 = vdwg.mxu0
  %784 = vst [vmem:[%s3] sm:$0xff] %v737
  %785 = vst [vmem:[%s3 + $0x8] sm:$0xff] %v740
  %786 = vst [vmem:[%s3 + $0x10] sm:$0xff] %v743
  %787 = vst [vmem:[%s3 + $0x18] sm:$0xff] %v746
  %788 = vst [vmem:[%s3 + $0x20] sm:$0xff] %v749
  %789 = vst [vmem:[%s3 + $0x28] sm:$0xff] %v752
  %790 = vst [vmem:[%s3 + $0x30] sm:$0xff] %v755
  %791 = vst [vmem:[%s3 + $0x38] sm:$0xff] %v758
  %792 = vst [vmem:[%s3 + $0x40] sm:$0xff] %v761
  %793 = vst [vmem:[%s3 + $0x48] sm:$0xff] %v764
  %794 = vst [vmem:[%s3 + $0x50] sm:$0xff] %v767
  %795 = vst [vmem:[%s3 + $0x58] sm:$0xff] %v770
  %796 = vst [vmem:[%s3 + $0x60] sm:$0xff] %v773
  %797 = vst [vmem:[%s3 + $0x68] sm:$0xff] %v776
  %798 = vst [vmem:[%s3 + $0x70] sm:$0xff] %v779
  %799 = vst [vmem:[%s3 + $0x78] sm:$0xff] %v782
  // Predicated region
  $region14: #{_match_costs_device.3} parent=0 // pred_check
    _
  $region15: #{_match_costs_device.3} parent=0 // pred_check_branch
    %801 = sbr.rel (0) target = $region17
  $region16: #{_match_costs_device.3} parent=0 // pred_region
    _
  $region17: #{_match_costs_device.3} parent=0 // pred_fallthru
    _
  // Predicated region
  $region18: #{_match_costs_device.3} parent=0 // pred_check
    _
  $region19: #{_match_costs_device.3} parent=0 // pred_check_branch
    %803 = sbr.rel (0) target = $region21
  $region20: #{_match_costs_device.3} parent=0 // pred_region
    _
  $region21: #{_match_costs_device.3} parent=0 // pred_fallthru
    _

</llo_original>
